<compile_context>
chip_gen: v6e
topology: v6e:2x2x1
jax: 0.10.0
libtpu: 0.0.40
codegen_flags: <defaults>
</compile_context>

<pallas_src>
import functools

import jax
import jax.numpy as jnp
from jax.experimental import pallas as pl
from jax.experimental.pallas import tpu as pltpu


# ---------------------------------------------------------------------------
# Generation-aware memory configuration.
# ---------------------------------------------------------------------------
@functools.lru_cache(maxsize=1)
def _mem_config():
    vmem = None
    try:
        info = pltpu.get_tpu_info()
        for name in ("vmem_capacity_bytes", "vmem_bytes", "vmem_size_bytes"):
            v = getattr(info, name, None)
            if isinstance(v, int) and v > 0:
                vmem = v
                break
    except Exception:
        vmem = None
    if vmem is not None and vmem >= 96 * 1024 * 1024:
        # 128 MiB-class VMEM (v5e / v6e): big tiles, default double buffering.
        return dict(max_weight_bytes=16 * 1024 * 1024,
                    vmem_limit_bytes=64 * 1024 * 1024,
                    weight_buffers=2)
    # 64 MiB-class VMEM (v7x) or unknown: 8 MB tiles, deeper weight pipeline.
    return dict(max_weight_bytes=8 * 1024 * 1024,
                vmem_limit_bytes=40 * 1024 * 1024,
                weight_buffers=3)


def _weight_spec(block_shape, index_map, buffers):
    """Weight-tile BlockSpec, optionally with a deeper DMA pipeline."""
    if buffers and buffers > 2:
        try:
            return pl.BlockSpec(block_shape, index_map,
                                pipeline_mode=pl.Buffered(buffers))
        except TypeError:
            pass  # older BlockSpec signature: fall back to default buffering
    return pl.BlockSpec(block_shape, index_map)


def _pick_tiles(K, N, *, weight_itemsize, max_weight_bytes):
    """Largest (tk, tn) with tk|K, tn|N and a weight tile <= max_weight_bytes.

    Prefers >=2 tiles along N (so the "parallel" grid axis can shard across
    v7x's two TensorCores) when N allows it.
    """
    tn_all = [c for c in (2048, 1024, 512, 256, 128) if N % c == 0]
    tn_multi = [c for c in tn_all if N // c >= 2]
    tn_cands = tn_multi if tn_multi else (tn_all if tn_all else [N])
    tk_all = [c for c in (4096, 3584, 2048, 1792, 1024, 512, 256, 128)
              if K % c == 0]
    tk_cands = tk_all if tk_all else [K]

    best = (tk_cands[-1], tn_cands[-1])
    best_area = 0
    for tn in tn_cands:
        for tk in tk_cands:
            if tk * tn * weight_itemsize <= max_weight_bytes and tk * tn > best_area:
                best, best_area = (tk, tn), tk * tn
    return best


# ---------------------------------------------------------------------------
# Fused conv3x3 (pad=1) + ReLU + 2x2 maxpool as MXU matmuls (<1% of runtime).
# ---------------------------------------------------------------------------
def _conv_relu_pool_kernel(p_ref, w_ref, b_ref, o_ref):
    # p_ref: (1, 4, P, 27)  im2col patches, one row per pooled cell, grouped by
    #                        2x2 pool quadrant.
    # w_ref: (27, Cout)     conv weight as a matmul matrix (di, dj, cin)-major.
    # b_ref: (1, Cout)
    # o_ref: (1, P, Cout)   pooled activation (P = 7*7), bf16.
    w = w_ref[...]
    acc = jnp.dot(p_ref[0, 0], w, preferred_element_type=jnp.float32)
    for q in range(1, 4):
        acc = jnp.maximum(
            acc, jnp.dot(p_ref[0, q], w, preferred_element_type=jnp.float32))
    # max(relu(x+b)) == relu(max(x)+b): bias/relu applied once after the pool.
    o_ref[0] = jnp.maximum(acc + b_ref[...], 0.0).astype(o_ref.dtype)


def conv_relu_pool(patches, w, b):
    # patches: (B, 4, P, F); w: (F, Cout); b: (1, Cout)  ->  (B, P, Cout) bf16
    B, Q, P, F = patches.shape
    Cout = w.shape[1]
    return pl.pallas_call(
        _conv_relu_pool_kernel,
        out_shape=jax.ShapeDtypeStruct((B, P, Cout), jnp.bfloat16),
        grid_spec=pltpu.PrefetchScalarGridSpec(
            num_scalar_prefetch=0,
            grid=(B,),
            in_specs=[
                pl.BlockSpec((1, Q, P, F), lambda i: (i, 0, 0, 0)),
                pl.BlockSpec((F, Cout), lambda i: (0, 0)),
                pl.BlockSpec((1, Cout), lambda i: (0, 0)),
            ],
            out_specs=pl.BlockSpec((1, P, Cout), lambda i: (i, 0, 0)),
        ),
        compiler_params=pltpu.CompilerParams(
            dimension_semantics=("parallel",)),
    )(patches, w, b)


# ---------------------------------------------------------------------------
# Linear (+ fused ReLU): bf16 weight stream, f32 accumulation into the
# resident output block (no acc scratch).
# ---------------------------------------------------------------------------
def _linear_kernel(x_ref, w_ref, b_ref, o_ref, *, tk, relu):
    k = pl.program_id(1)

    @pl.when(k == 0)
    def _():
        o_ref[...] = jnp.zeros_like(o_ref)

    off = pl.multiple_of(k * tk, 128)
    o_ref[...] += jnp.dot(x_ref[:, pl.ds(off, tk)], w_ref[...],
                          preferred_element_type=jnp.float32)

    @pl.when(k == pl.num_programs(1) - 1)
    def _():
        r = o_ref[...] + b_ref[...]
        if relu:
            r = jnp.maximum(r, 0.0)
        o_ref[...] = r


def linear(x, w, b, *, relu):
    # x: (B, K) bf16; w: (K, N) bf16 (torch Linear weight (N, K), transposed);
    # b: (N,) f32.  Computes [relu](x @ w + b) with f32 accumulation.
    B, K = x.shape
    N = w.shape[1]
    cfg = _mem_config()
    tk, tn = _pick_tiles(K, N, weight_itemsize=w.dtype.itemsize,
                         max_weight_bytes=cfg["max_weight_bytes"])
    b2 = b.reshape(1, N).astype(jnp.float32)
    kernel = functools.partial(_linear_kernel, tk=tk, relu=relu)
    return pl.pallas_call(
        kernel,
        out_shape=jax.ShapeDtypeStruct((B, N), jnp.float32),
        grid_spec=pltpu.PrefetchScalarGridSpec(
            num_scalar_prefetch=0,
            grid=(N // tn, K // tk),
            in_specs=[
                # Full (B, K) bf16 activation resident in VMEM: constant index
                # map -> single DMA; the pipeline is a pure weight stream.
                pl.BlockSpec((B, K), lambda j, k: (0, 0)),
                _weight_spec((tk, tn), lambda j, k: (k, j),
                             cfg["weight_buffers"]),
                pl.BlockSpec((1, tn), lambda j, k: (0, j)),
            ],
            out_specs=pl.BlockSpec((B, tn), lambda j, k: (0, j)),
        ),
        compiler_params=pltpu.CompilerParams(
            dimension_semantics=("parallel", "arbitrary"),
            vmem_limit_bytes=cfg["vmem_limit_bytes"]),
    )(x, w, b2)


# ---------------------------------------------------------------------------
# Fused tail: relu(x @ w3 + b3) @ w_out, computed per N-slab of w3 so the slab
# axis stays "parallel"; per-slab partial outputs are summed outside (tiny).
# ---------------------------------------------------------------------------
def _fused_tail_kernel(x_ref, w3_ref, b3_ref, wo_ref, o_ref, acc_ref, *, tk):
    k = pl.program_id(1)

    @pl.when(k == 0)
    def _():
        acc_ref[...] = jnp.zeros_like(acc_ref)

    off = pl.multiple_of(k * tk, 128)
    acc_ref[...] += jnp.dot(x_ref[:, pl.ds(off, tk)], w3_ref[...],
                            preferred_element_type=jnp.float32)

    @pl.when(k == pl.num_programs(1) - 1)
    def _():
        h = jnp.maximum(acc_ref[...] + b3_ref[...], 0.0)        # (B, tn) f32
        o_ref[0] = jnp.dot(h.astype(wo_ref.dtype), wo_ref[...],
                           preferred_element_type=jnp.float32)  # (B, No)


def fused_tail(x, w3, b3, w_out):
    # x: (B, K) bf16; w3: (K, N) bf16; b3: (N,) f32; w_out: (N, No) bf16.
    # Returns sum_j relu(x @ w3[:, j] + b3[j]) @ w_out[j, :]  -> (B, No) f32.
    B, K = x.shape
    N = w3.shape[1]
    No = w_out.shape[1]
    cfg = _mem_config()
    tk, tn = _pick_tiles(K, N, weight_itemsize=w3.dtype.itemsize,
                         max_weight_bytes=cfg["max_weight_bytes"])
    nj = N // tn
    b3r = b3.reshape(1, N).astype(jnp.float32)
    kernel = functools.partial(_fused_tail_kernel, tk=tk)
    partials = pl.pallas_call(
        kernel,
        out_shape=jax.ShapeDtypeStruct((nj, B, No), jnp.float32),
        grid_spec=pltpu.PrefetchScalarGridSpec(
            num_scalar_prefetch=0,
            grid=(nj, K // tk),
            in_specs=[
                pl.BlockSpec((B, K), lambda j, k: (0, 0)),
                _weight_spec((tk, tn), lambda j, k: (k, j),
                             cfg["weight_buffers"]),
                pl.BlockSpec((1, tn), lambda j, k: (0, j)),
                pl.BlockSpec((tn, No), lambda j, k: (j, 0)),
            ],
            out_specs=pl.BlockSpec((1, B, No), lambda j, k: (j, 0, 0)),
            scratch_shapes=[pltpu.VMEM((B, tn), jnp.float32)],
        ),
        compiler_params=pltpu.CompilerParams(
            dimension_semantics=("parallel", "arbitrary"),
            vmem_limit_bytes=cfg["vmem_limit_bytes"]),
    )(x, w3, b3r, w_out)
    return partials.sum(axis=0)


# ---------------------------------------------------------------------------
# ModifiedVGG
# ---------------------------------------------------------------------------
class ModifiedVGGPallas:
    def __init__(self, key, learn_pos=False):
        out_dim = 3 if learn_pos else 1
        self.out_dim = out_dim
        ks = jax.random.split(key, 10)

        def _w(k, shape, fan_in, dtype=jnp.float32):
            return (jax.random.normal(k, shape, jnp.float32)
                    * (1.0 / jnp.sqrt(jnp.float32(fan_in)))).astype(dtype)

        # features stand-in: conv3x3 3 -> 512.  Torch layout (Cout,Cin,kH,kW)
        # is folded once into a (27, Cout) matmul matrix with row order
        # (di, dj, cin) matching the im2col patch feature order.
        w_conv_t = _w(ks[0], (512, 3, 3, 3), 3 * 3 * 3)
        self.w_conv = jnp.transpose(w_conv_t, (2, 3, 1, 0)).reshape(27, 512)
        self.b_conv = _w(ks[1], (512,), 3 * 3 * 3).reshape(1, 512)

        # classifier: Linear(512*7*7,4096)->ReLU->Dropout
        #           -> Linear(4096,4096)->ReLU->Dropout
        #           -> Linear(4096,2048)->ReLU
        # Weights stored transposed (K, N) and cast to bf16 (HBM-bound stream);
        # biases stay f32 and are added after f32 accumulation.
        H = W = 7
        C = 512
        w1_t = _w(ks[2], (C * H * W, 4096), C * H * W)   # rows: torch CHW order
        # One-time row permutation so w1 consumes the kernel's HWC-flattened
        # pooled activation directly (no NHWC->NCHW transpose at runtime):
        # new row (h*W+w)*C + c  <-  torch row c*(H*W) + h*W + w
        perm = (jnp.arange(C)[None, :] * (H * W)
                + jnp.arange(H * W)[:, None]).reshape(-1)
        self.w1 = w1_t.astype(jnp.bfloat16)[perm]
        self.b1 = _w(ks[3], (4096,), C * H * W)
        self.w2 = _w(ks[4], (4096, 4096), 4096, jnp.bfloat16)
        self.b2 = _w(ks[5], (4096,), 4096)
        self.w3 = _w(ks[6], (4096, 2048), 4096, jnp.bfloat16)
        self.b3 = _w(ks[7], (2048,), 4096)

        # output: Linear(2048, out_dim), N padded to one 128-lane tile so the
        # output block is lane-dense; sliced back to out_dim outside.
        w_out = _w(ks[8], (2048, out_dim), 2048)
        b_out = _w(ks[9], (out_dim,), 2048)
        self.w_out = (jnp.zeros((2048, 128), jnp.bfloat16)
                      .at[:, :out_dim].set(w_out.astype(jnp.bfloat16)))
        self.b_out = jnp.zeros((128,), jnp.float32).at[:out_dim].set(b_out)

    def __call__(self, x_nchw):
        # x_nchw: (B, 3, 14, 14) float32
        B, _, Hc, Wc = x_nchw.shape

        # ---- im2col + pool-quadrant grouping (tiny XLA indexing glue) ----
        x = jnp.transpose(x_nchw, (0, 2, 3, 1))                     # (B,14,14,3)
        xp = jnp.pad(x, ((0, 0), (1, 1), (1, 1), (0, 0)))           # (B,16,16,3)
        cols = [xp[:, di:di + Hc, dj:dj + Wc, :]
                for di in range(3) for dj in range(3)]
        patches = jnp.concatenate(cols, axis=-1)                    # (B,14,14,27)
        quads = jnp.stack([patches[:, qi::2, qj::2, :]
                           for qi in (0, 1) for qj in (0, 1)], axis=1)
        patches_q = quads.reshape(B, 4, (Hc // 2) * (Wc // 2), 27)  # (B,4,49,27)

        # ---- fused conv3x3 + ReLU + 2x2 maxpool (MXU), bf16 out ----
        x = conv_relu_pool(patches_q, self.w_conv, self.b_conv)     # (B,49,512)
        x = x.reshape(B, -1)                                        # (B,25088) bf16, HWC

        # ---- classifier (bf16 weight stream, f32 accumulation) ----
        x = linear(x, self.w1, self.b1, relu=True)                  # (B,4096) f32
        x = linear(x.astype(jnp.bfloat16), self.w2, self.b2, relu=True)
        # Fused: Linear(4096,2048)+ReLU and Linear(2048,128) in one call.
        x = fused_tail(x.astype(jnp.bfloat16), self.w3, self.b3, self.w_out)
        x = x + self.b_out[None, :]
        return x[:, :self.out_dim]


if __name__ == "__main__":
    key = jax.random.PRNGKey(0)
    kx, kp = jax.random.split(key)
    # small stand-in input: (B=2, C=3, H=14, W=14) so the stand-in features
    # block produces the (B, 512, 7, 7) tensor the classifier requires.
    x = jax.random.normal(kx, (2, 3, 14, 14), jnp.float32)
    model = ModifiedVGGPallas(kp, learn_pos=False)
    out = jax.block_until_ready(model(x))
    assert out.shape == (2, 1) and out.dtype == jnp.float32
    print("KERNEL_OK")
</pallas_src>

<mosaic_0001>
module attributes {stable_mosaic.version = 11 : i64} {
  func.func @_conv_relu_pool_kernel(%arg0: i32, %arg1: memref<1x4x49x27xf32, #tpu.memory_space<vmem>>, %arg2: memref<27x512xf32, #tpu.memory_space<vmem>>, %arg3: memref<1x512xf32, #tpu.memory_space<vmem>>, %arg4: memref<1x49x512xbf16, #tpu.memory_space<vmem>>) attributes {dimension_semantics = [#tpu.dimension_semantics<parallel>], iteration_bounds = array<i64: 2>, scalar_prefetch = 0 : i64, scratch_operands = 0 : i64, tpu.core_type = #tpu.core_type<tc>, window_params = [{transform_indices = @transform_0, window_bounds = array<i64: 1, 4, 49, 27>}, {pipeline_mode = #tpu.pipeline_mode<synchronous>, transform_indices = @transform_1, window_bounds = array<i64: 27, 512>}, {pipeline_mode = #tpu.pipeline_mode<synchronous>, transform_indices = @transform_2, window_bounds = array<i64: 1, 512>}, {transform_indices = @transform_3, window_bounds = array<i64: 1, 49, 512>}]} {
    %c0 = arith.constant 0 : index
    %c0_0 = arith.constant 0 : index
    %0 = vector.load %arg2[%c0, %c0_0] : memref<27x512xf32, #tpu.memory_space<vmem>>, vector<27x512xf32>
    %c0_1 = arith.constant 0 : index
    %c0_2 = arith.constant 0 : index
    %c0_3 = arith.constant 0 : index
    %c0_4 = arith.constant 0 : index
    %1 = vector.load %arg1[%c0_1, %c0_2, %c0_3, %c0_4] : memref<1x4x49x27xf32, #tpu.memory_space<vmem>>, vector<1x1x49x27xf32>
    %2 = vector.shape_cast %1 : vector<1x1x49x27xf32> to vector<49x27xf32>
    %cst = arith.constant dense<0.000000e+00> : vector<49x512xf32>
    %3 = tpu.matmul %2, %0, %cst {dimension_numbers = #tpu.dot_dimension_numbers<[1], [0], [0], [1], [0, 0, 1, 1], [], []>} : vector<49x27xf32>, vector<27x512xf32>, vector<49x512xf32> -> vector<49x512xf32>
    %c0_5 = arith.constant 0 : index
    %c1 = arith.constant 1 : index
    %c0_6 = arith.constant 0 : index
    %c0_7 = arith.constant 0 : index
    %4 = vector.load %arg1[%c0_5, %c1, %c0_6, %c0_7] : memref<1x4x49x27xf32, #tpu.memory_space<vmem>>, vector<1x1x49x27xf32>
    %5 = vector.shape_cast %4 : vector<1x1x49x27xf32> to vector<49x27xf32>
    %cst_8 = arith.constant dense<0.000000e+00> : vector<49x512xf32>
    %6 = tpu.matmul %5, %0, %cst_8 {dimension_numbers = #tpu.dot_dimension_numbers<[1], [0], [0], [1], [0, 0, 1, 1], [], []>} : vector<49x27xf32>, vector<27x512xf32>, vector<49x512xf32> -> vector<49x512xf32>
    %7 = arith.maximumf %3, %6 : vector<49x512xf32>
    %c0_9 = arith.constant 0 : index
    %c2 = arith.constant 2 : index
    %c0_10 = arith.constant 0 : index
    %c0_11 = arith.constant 0 : index
    %8 = vector.load %arg1[%c0_9, %c2, %c0_10, %c0_11] : memref<1x4x49x27xf32, #tpu.memory_space<vmem>>, vector<1x1x49x27xf32>
    %9 = vector.shape_cast %8 : vector<1x1x49x27xf32> to vector<49x27xf32>
    %cst_12 = arith.constant dense<0.000000e+00> : vector<49x512xf32>
    %10 = tpu.matmul %9, %0, %cst_12 {dimension_numbers = #tpu.dot_dimension_numbers<[1], [0], [0], [1], [0, 0, 1, 1], [], []>} : vector<49x27xf32>, vector<27x512xf32>, vector<49x512xf32> -> vector<49x512xf32>
    %11 = arith.maximumf %7, %10 : vector<49x512xf32>
    %c0_13 = arith.constant 0 : index
    %c3 = arith.constant 3 : index
    %c0_14 = arith.constant 0 : index
    %c0_15 = arith.constant 0 : index
    %12 = vector.load %arg1[%c0_13, %c3, %c0_14, %c0_15] : memref<1x4x49x27xf32, #tpu.memory_space<vmem>>, vector<1x1x49x27xf32>
    %13 = vector.shape_cast %12 : vector<1x1x49x27xf32> to vector<49x27xf32>
    %cst_16 = arith.constant dense<0.000000e+00> : vector<49x512xf32>
    %14 = tpu.matmul %13, %0, %cst_16 {dimension_numbers = #tpu.dot_dimension_numbers<[1], [0], [0], [1], [0, 0, 1, 1], [], []>} : vector<49x27xf32>, vector<27x512xf32>, vector<49x512xf32> -> vector<49x512xf32>
    %15 = arith.maximumf %11, %14 : vector<49x512xf32>
    %c0_17 = arith.constant 0 : index
    %c0_18 = arith.constant 0 : index
    %16 = vector.load %arg3[%c0_17, %c0_18] : memref<1x512xf32, #tpu.memory_space<vmem>>, vector<1x512xf32>
    %17 = vector.broadcast %16 : vector<1x512xf32> to vector<49x512xf32>
    %18 = arith.addf %15, %17 : vector<49x512xf32>
    %cst_19 = arith.constant 0.000000e+00 : f32
    %19 = vector.broadcast %cst_19 : f32 to vector<49x512xf32>
    %20 = arith.maximumf %18, %19 : vector<49x512xf32>
    %21 = arith.truncf %20 : vector<49x512xf32> to vector<49x512xbf16>
    %c0_20 = arith.constant 0 : index
    %c0_21 = arith.constant 0 : index
    %c0_22 = arith.constant 0 : index
    %22 = vector.load %arg4[%c0_20, %c0_21, %c0_22] : memref<1x49x512xbf16, #tpu.memory_space<vmem>>, vector<1x49x512xbf16>
    %23 = vector.shape_cast %22 : vector<1x49x512xbf16> to vector<49x512xbf16>
    %24 = vector.shape_cast %21 : vector<49x512xbf16> to vector<1x49x512xbf16>
    tpu.vector_store %arg4[%c0_20, %c0_21, %c0_22], %24 {strides = array<i32>} : memref<1x49x512xbf16, #tpu.memory_space<vmem>>, vector<1x49x512xbf16>,
    return
  }
  func.func @transform_0(%arg0: i32) -> (i32, i32, i32, i32) {
    %c0_i32 = arith.constant 0 : i32
    %c0_i32_0 = arith.constant 0 : i32
    %c0_i32_1 = arith.constant 0 : i32
    %c0_i32_2 = arith.constant 0 : i32
    return %arg0, %c0_i32, %c0_i32_0, %c0_i32_1 : i32, i32, i32, i32
  }
  func.func @transform_1(%arg0: i32) -> (i32, i32) {
    %c0_i32 = arith.constant 0 : i32
    %c0_i32_0 = arith.constant 0 : i32
    %c0_i32_1 = arith.constant 0 : i32
    return %c0_i32, %c0_i32_0 : i32, i32
  }
  func.func @transform_2(%arg0: i32) -> (i32, i32) {
    %c0_i32 = arith.constant 0 : i32
    %c0_i32_0 = arith.constant 0 : i32
    %c0_i32_1 = arith.constant 0 : i32
    return %c0_i32, %c0_i32_0 : i32, i32
  }
  func.func @transform_3(%arg0: i32) -> (i32, i32, i32) {
    %c0_i32 = arith.constant 0 : i32
    %c0_i32_0 = arith.constant 0 : i32
    %c0_i32_1 = arith.constant 0 : i32
    return %arg0, %c0_i32, %c0_i32_0 : i32, i32, i32
  }
}

</mosaic_0001>

<llo_original>
// kernel: tpu_custom_call.1
$region0: #{tpu_custom_call.1}
  #allocation0 [shape = 'u32[]', space=smem, size = 0x4, offset = 0x4, fixed_abs, tag = 'smem constant byte address 0x4 - core index']
  #allocation1 [shape = 'u32[144,128]{1,0:T(1,128)}', space=vmem, size = 0x12000, scoped, tag = 'internal scratch']
  %s0 = inlined_call_operand.vmem [shape: f32[2,4,49,27], index: 0, kind: input, shape index: {}]
  %s1 = inlined_call_operand.vmem [shape: f32[27,512], index: 1, kind: input, shape index: {}]
  %s2 = inlined_call_operand.vmem [shape: f32[1,512], index: 2, kind: input, shape index: {}]
  %s3 = inlined_call_operand.vmem [shape: bf16[2,49,512], index: 3, kind: output, shape index: {}]
  %s4 = sld [smem:[#allocation0]]
  $region45: #{tpu_custom_call.1} parent=0
    _
  %s6 = ssub.s32 1, %s4
  %s7 = scalar_select 0, %s6, %s4
  loop: start=0, step=1, limit=4
  $region2: #{tpu_custom_call.1} parent=0 // loop_pre_header
    _
  $region3: #{tpu_custom_call.1} parent=0 // loop_header
    %s9 = sphi 0, %s13
    %p10 = scmp.ge.s32.totalorder %s9, 4
    %s19 = sphi 0, %s21
    %s22 = sphi 0, %s19
    %s23 = sphi 0, %s22
    %s39 = sphi 0, %s23
    %s43 = sphi 0, %s43
    %s45 = sphi 0, %s43
    %s46 = sphi 0, %s45
    %s60 = sphi 0, %s46
    %s64 = sphi 0, %s64
    %s66 = sphi 0, %s64
    %s67 = sphi 0, %s66
    %s81 = sphi 0, %s67
    %s87 = sphi 0, %s89
    %s90 = sphi 0, %s87
    %s91 = sphi 0, %s90
    %s107 = sphi 0, %s91
  $region4: #{tpu_custom_call.1} parent=0 // loop_header_branch
    %12 = sbr.rel (%p10) target = $region8
  $region5: #{tpu_custom_call.1} parent=0 // loop_body
    %s14 = ssub.s32 %s9, 1
    %s15 = ssub.s32 %s9, 2
    %s16 = sadd.s32 %s9, 1
    %s17 = ssub.s32 %s9, %s16
    %p18 = scmp.eq.s32.totalorder %s17, 0
    %s20 = sadd.s32 %s19, 1
    %s21 = scalar_select %p18, %s19, %s20
    %p24 = pneg %p18
    %p25 = scmp.eq.s32.totalorder %s9, 1
    %p26 = por %p24, %p25
    %p27 = scmp.ne.s32.totalorder %s19, %s22
    %p28 = scmp.eq.s32.totalorder %s9, 0
    %p29 = por %p27, %p28
    %p30 = scmp.ne.s32.totalorder %s19, %s22
    %p31 = scmp.eq.s32.totalorder %s14, 1
    %p32 = por %p30, %p31
    %p33 = scmp.ne.s32.totalorder %s22, %s23
    %p34 = scmp.eq.s32.totalorder %s14, 0
    %p35 = por %p33, %p34
    %p36 = scmp.ne.s32.totalorder %s22, %s23
    %p37 = scmp.eq.s32.totalorder %s15, 1
    %p38 = por %p36, %p37
    %p40 = scmp.ne.s32.totalorder %s23, %s39
    %p41 = scmp.eq.s32.totalorder %s15, 0
    %p42 = por %p40, %p41
    %s44 = sadd.s32 %s43, 1
    %p47 = scmp.eq.s32.totalorder %s9, 1
    %p48 = scmp.ne.s32.totalorder %s43, %s45
    %p49 = scmp.eq.s32.totalorder %s9, 0
    %p50 = por %p48, %p49
    %p51 = scmp.ne.s32.totalorder %s43, %s45
    %p52 = scmp.eq.s32.totalorder %s14, 1
    %p53 = por %p51, %p52
    %p54 = scmp.ne.s32.totalorder %s45, %s46
    %p55 = scmp.eq.s32.totalorder %s14, 0
    %p56 = por %p54, %p55
    %p57 = scmp.ne.s32.totalorder %s45, %s46
    %p58 = scmp.eq.s32.totalorder %s15, 1
    %p59 = por %p57, %p58
    %p61 = scmp.ne.s32.totalorder %s46, %s60
    %p62 = scmp.eq.s32.totalorder %s15, 0
    %p63 = por %p61, %p62
    %s65 = sadd.s32 %s64, 1
    %p68 = scmp.eq.s32.totalorder %s9, 1
    %p69 = scmp.ne.s32.totalorder %s64, %s66
    %p70 = scmp.eq.s32.totalorder %s9, 0
    %p71 = por %p69, %p70
    %p72 = scmp.ne.s32.totalorder %s64, %s66
    %p73 = scmp.eq.s32.totalorder %s14, 1
    %p74 = por %p72, %p73
    %p75 = scmp.ne.s32.totalorder %s66, %s67
    %p76 = scmp.eq.s32.totalorder %s14, 0
    %p77 = por %p75, %p76
    %p78 = scmp.ne.s32.totalorder %s66, %s67
    %p79 = scmp.eq.s32.totalorder %s15, 1
    %p80 = por %p78, %p79
    %p82 = scmp.ne.s32.totalorder %s67, %s81
    %p83 = scmp.eq.s32.totalorder %s15, 0
    %p84 = por %p82, %p83
    %s85 = ssub.s32 %s9, %s16
    %p86 = scmp.eq.s32.totalorder %s85, 0
    %s88 = sadd.s32 %s87, 1
    %s89 = scalar_select %p86, %s87, %s88
    %p92 = pneg %p86
    %p93 = scmp.eq.s32.totalorder %s9, 1
    %p94 = por %p92, %p93
    %p95 = scmp.ne.s32.totalorder %s87, %s90
    %p96 = scmp.eq.s32.totalorder %s9, 0
    %p97 = por %p95, %p96
    %p98 = scmp.ne.s32.totalorder %s87, %s90
    %p99 = scmp.eq.s32.totalorder %s14, 1
    %p100 = por %p98, %p99
    %p101 = scmp.ne.s32.totalorder %s90, %s91
    %p102 = scmp.eq.s32.totalorder %s14, 0
    %p103 = por %p101, %p102
    %p104 = scmp.ne.s32.totalorder %s90, %s91
    %p105 = scmp.eq.s32.totalorder %s15, 1
    %p106 = por %p104, %p105
    %p108 = scmp.ne.s32.totalorder %s91, %s107
    %p109 = scmp.eq.s32.totalorder %s15, 0
    %p110 = por %p108, %p109
    %p111 = scmp.le.s32.totalorder 1, %s9
    %p112 = scmp.lt.s32.totalorder %s9, 3
    %p113 = pnand %p111, %p112
    %p114 = pneg %p113
    // Predicated region
    $region9: #{tpu_custom_call.1} parent=5 // pred_check
      _
    $region10: #{tpu_custom_call.1} parent=5 // pred_check_branch
      %116 = sbr.rel (%p113) target = $region12
    $region11: #{tpu_custom_call.1} parent=5 // pred_region
      %s117 = ssub.s32 %s9, 1
      // Predicated region
      $region13: #{tpu_custom_call.1} parent=11 // pred_check
        %p118 = pneg %p56
      $region14: #{tpu_custom_call.1} parent=11 // pred_check_branch
        %120 = sbr.rel (%p118) target = $region16
      $region15: #{tpu_custom_call.1} parent=11 // pred_region
        _
      $region16: #{tpu_custom_call.1} parent=11 // pred_fallthru
        _
      // Predicated region
      $region17: #{tpu_custom_call.1} parent=11 // pred_check
        %p121 = pneg %p77
      $region18: #{tpu_custom_call.1} parent=11 // pred_check_branch
        %123 = sbr.rel (%p121) target = $region20
      $region19: #{tpu_custom_call.1} parent=11 // pred_region
        _
      $region20: #{tpu_custom_call.1} parent=11 // pred_fallthru
        _
    $region12: #{tpu_custom_call.1} parent=5 // pred_fallthru
      _
    %p124 = scmp.lt.s32.totalorder %s9, 2
    // Predicated region
    $region21: #{tpu_custom_call.1} parent=5 // pred_check
      %p125 = pneg %p124
    $region22: #{tpu_custom_call.1} parent=5 // pred_check_branch
      %127 = sbr.rel (%p125) target = $region24
    $region23: #{tpu_custom_call.1} parent=5 // pred_region
      // Predicated region
      $region25: #{tpu_custom_call.1} parent=23 // pred_check
        %p128 = pneg %p29
      $region26: #{tpu_custom_call.1} parent=23 // pred_check_branch
        %130 = sbr.rel (%p128) target = $region28
      $region27: #{tpu_custom_call.1} parent=23 // pred_region
        %p131 = scmp.lt.s32.totalorder %s9, 1
        %s132 = scalar_select %p131, %s9, 1
        %s133 = smul.addr %s132, 28
        %s134 = smul.addr %s133, 8
        %s135 = scalar_lea.vmem %s0, %s134
      $region28: #{tpu_custom_call.1} parent=23 // pred_fallthru
        _
    $region24: #{tpu_custom_call.1} parent=5 // pred_fallthru
      _
    %p136 = scmp.le.s32.totalorder 1, %s9
    %p137 = scmp.lt.s32.totalorder %s9, 3
    %p138 = pnand %p136, %p137
    %p139 = pneg %p138
    // Predicated region
    $region29: #{tpu_custom_call.1} parent=5 // pred_check
      _
    $region30: #{tpu_custom_call.1} parent=5 // pred_check_branch
      %141 = sbr.rel (%p138) target = $region32
    $region31: #{tpu_custom_call.1} parent=5 // pred_region
      %s142 = ssub.s32 %s9, 1
      %p143 = scmp.lt.s32.totalorder %s14, 1
      %s144 = scalar_select %p143, %s14, 1
      %s145 = smul.addr %s144, 28
      %s146 = smul.addr %s145, 8
      %s147 = scalar_lea.vmem %s0, %s146
      %p148 = pneg %p35
      %p149 = pneg %p32
      %p150 = pneg %p56
      %p151 = pneg %p53
      %p152 = pneg %p77
      %p153 = pneg %p74
      %p154 = pneg %p103
      %p155 = pneg %p100
      %p156 = scmp.lt.s32.totalorder %s14, 1
      %s157 = scalar_select %p156, %s14, 1
      %s158 = smul.addr %s157, 28
      %s159 = smul.addr %s158, 4
      %s160 = scalar_lea.vmem %s3, %s159
      %p161 = scmp.lt.s32.totalorder %s14, 1
      %s162 = scalar_select %p161, %s14, 1
      %s163 = smul.addr %s162, 28
      %s164 = smul.addr %s163, 8
      %s165 = scalar_lea.vmem %s0, %s164
      %p166 = scmp.lt.s32.totalorder %s14, 1
      %s167 = scalar_select %p166, %s14, 1
      %s168 = smul.addr %s167, 28
      %s169 = smul.addr %s168, 4
      %s170 = scalar_lea.vmem %s3, %s169
      %v171 = vld [vmem:[%s1] sm:$0xff]
      %v172 = vld [vmem:[%s1 + $0x8] sm:$0xff]
      %v173 = vld [vmem:[%s1 + $0x10] sm:$0xff]
      %v174 = vld [vmem:[%s1 + $0x18] sm:$0xff]
      %v175 = vld [vmem:[%s1 + $0x20] sm:$0xff]
      %v176 = vld [vmem:[%s1 + $0x28] sm:$0xff]
      %v177 = vld [vmem:[%s1 + $0x30] sm:$0xff]
      %v178 = vld [vmem:[%s1 + $0x38] sm:$0xff]
      %v179 = vld [vmem:[%s1 + $0x40] sm:$0xff]
      %v180 = vld [vmem:[%s1 + $0x48] sm:$0xff]
      %v181 = vld [vmem:[%s1 + $0x50] sm:$0xff]
      %v182 = vld [vmem:[%s1 + $0x58] sm:$0xff]
      %v183 = vld [vmem:[%s1 + $0x60] sm:$0x7]
      %v184 = vld [vmem:[%s1 + $0x68] sm:$0x7]
      %v185 = vld [vmem:[%s1 + $0x70] sm:$0x7]
      %v186 = vld [vmem:[%s1 + $0x78] sm:$0x7]
      %v187 = vld [vmem:[%s165] sm:$0xff]
      %v188 = vld [vmem:[%s165 + $0x8] sm:$0xff]
      %v189 = vld [vmem:[%s165 + $0x10] sm:$0xff]
      %v190 = vld [vmem:[%s165 + $0x18] sm:$0xff]
      %v191 = vld [vmem:[%s165 + $0x20] sm:$0xff]
      %v192 = vld [vmem:[%s165 + $0x28] sm:$0xff]
      %v193 = vld [vmem:[%s165 + $0x30] sm:$0x1]
      %vm194 = vcmask 220160
      %v196 = vsel %vm194, %v187, 0
      %v199 = vsel %vm194, %v188, 0
      %v202 = vsel %vm194, %v189, 0
      %v205 = vsel %vm194, %v190, 0
      %v208 = vsel %vm194, %v191, 0
      %v211 = vsel %vm194, %v192, 0
      %v214 = vsel %vm194, %v193, 0
      %vm216 = vcmask 1042432
      %v218 = vsel %vm216, %v183, 0
      %v221 = vsel %vm216, %v184, 0
      %v224 = vsel %vm216, %v185, 0
      %v227 = vsel %vm216, %v186, 0
      %229 = vmatprep.subr.mxu0 0.0
      %230 = vmatpush1.msra.mxu0 0.0
      %231 = vmatprep.subr.mxu0 0.0
      %232 = vmatpush1.msra.mxu0 0.0
      %233 = vmatprep.subr.mxu0 0.0
      %234 = vmatpush1.msra.mxu0 0.0
      %235 = vmatprep.subr.mxu0 0.0
      %236 = vmatpush1.msra.mxu0 0.0
      %237 = vmatprep.subr.mxu0 0.0
      %238 = vmatpush1.msra.mxu0 0.0
      %239 = vmatprep.subr.mxu0 0.0
      %240 = vmatpush1.msra.mxu0 0.0
      %241 = vmatprep.subr.mxu0 0.0
      %242 = vmatpush1.msra.mxu0 0.0
      %243 = vmatprep.subr.mxu0 0.0
      %244 = vmatpush1.msra.mxu0 0.0
      %245 = vmatprep.subr.mxu0 0.0
      %246 = vmatpush1.msra.mxu0 0.0
      %247 = vmatprep.subr.mxu0 0.0
      %248 = vmatpush1.msra.mxu0 0.0
      %249 = vmatprep.subr.mxu0 0.0
      %250 = vmatpush1.msra.mxu0 0.0
      %251 = vmatprep.subr.mxu0 0.0
      %252 = vmatpush1.msra.mxu0 0.0
      %253 = vmatprep.subr.mxu0 %v221
      %254 = vmatpush1.msra.mxu0 %v218
      %255 = vmatprep.subr.mxu0 %v180
      %256 = vmatpush1.msra.mxu0 %v179
      %257 = vmatprep.subr.mxu0 %v176
      %258 = vmatpush1.msra.mxu0 %v175
      %259 = vmatprep.subr.mxu0 %v172
      %260 = vmatpush1.msra.mxu0 %v171
      %261 = vmatprep.subr.mxu0 0.0
      %262 = vmatpush2.msra.mxu0 0.0
      %263 = vmatprep.subr.mxu0 0.0
      %264 = vmatpush2.msra.mxu0 0.0
      %265 = vmatprep.subr.mxu0 0.0
      %266 = vmatpush2.msra.mxu0 0.0
      %267 = vmatprep.subr.mxu0 0.0
      %268 = vmatpush2.msra.mxu0 0.0
      %269 = vmatprep.subr.mxu0 0.0
      %270 = vmatpush2.msra.mxu0 0.0
      %271 = vmatprep.subr.mxu0 0.0
      %272 = vmatpush2.msra.mxu0 0.0
      %273 = vmatprep.subr.mxu0 0.0
      %274 = vmatpush2.msra.mxu0 0.0
      %275 = vmatprep.subr.mxu0 0.0
      %276 = vmatpush2.msra.mxu0 0.0
      %277 = vmatprep.subr.mxu0 0.0
      %278 = vmatpush2.msra.mxu0 0.0
      %279 = vmatprep.subr.mxu0 0.0
      %280 = vmatpush2.msra.mxu0 0.0
      %281 = vmatprep.subr.mxu0 0.0
      %282 = vmatpush2.msra.mxu0 0.0
      %283 = vmatprep.subr.mxu0 0.0
      %284 = vmatpush2.msra.mxu0 0.0
      %285 = vmatprep.subr.mxu0 0.0
      %286 = vmatpush2.msra.mxu0 0.0
      %287 = vmatprep.subr.mxu0 0.0
      %288 = vmatpush2.msra.mxu0 0.0
      %289 = vmatprep.subr.mxu0 0.0
      %290 = vmatpush2.msra.mxu0 0.0
      %291 = vmatprep.subr.mxu0 0.0
      %292 = vmatpush2.msra.mxu0 0.0
      %293 = vmatprep.mubr.f32.mxu0 0.0
      %294 = vmatmul.mubr.f32.gmra.mxu0 %v196
      %v295 = vpop.f32.mrf.mxu0
      %v296 = vadd.f32 0.0, %v295
      %v297 = vpop.f32.mrf.mxu0
      %v298 = vadd.f32 0.0, %v297
      %299 = vmatprep.mubr.f32.mxu0 0.0
      %300 = vmatmul.mubr.f32.gmra.mxu0 %v199
      %v301 = vpop.f32.mrf.mxu0
      %v302 = vadd.f32 0.0, %v301
      %v303 = vpop.f32.mrf.mxu0
      %v304 = vadd.f32 0.0, %v303
      %305 = vmatprep.mubr.f32.mxu0 0.0
      %306 = vmatmul.mubr.f32.gmra.mxu0 %v202
      %v307 = vpop.f32.mrf.mxu0
      %v308 = vadd.f32 0.0, %v307
      %v309 = vpop.f32.mrf.mxu0
      %v310 = vadd.f32 0.0, %v309
      %311 = vmatprep.mubr.f32.mxu0 0.0
      %312 = vmatmul.mubr.f32.gmra.mxu0 %v205
      %v313 = vpop.f32.mrf.mxu0
      %v314 = vadd.f32 0.0, %v313
      %v315 = vpop.f32.mrf.mxu0
      %v316 = vadd.f32 0.0, %v315
      %317 = vmatprep.mubr.f32.mxu0 0.0
      %318 = vmatmul.mubr.f32.gmra.mxu0 %v208
      %v319 = vpop.f32.mrf.mxu0
      %v320 = vadd.f32 0.0, %v319
      %v321 = vpop.f32.mrf.mxu0
      %v322 = vadd.f32 0.0, %v321
      %323 = vmatprep.mubr.f32.mxu0 0.0
      %324 = vmatmul.mubr.f32.gmra.mxu0 %v211
      %v325 = vpop.f32.mrf.mxu0
      %v326 = vadd.f32 0.0, %v325
      %v327 = vpop.f32.mrf.mxu0
      %v328 = vadd.f32 0.0, %v327
      %329 = vmatprep.mubr.f32.mxu0 0.0
      %330 = vmatmul.mubr.f32.gmra.mxu0 %v214
      %v331 = vpop.f32.mrf.mxu0
      %v332 = vadd.f32 0.0, %v331
      %v333 = vpop.f32.mrf.mxu0
      %v334 = vadd.f32 0.0, %v333
      %335 = vdwg.mxu0
      %336 = vmatprep.subr.mxu0 0.0
      %337 = vmatpush1.msra.mxu0 0.0
      %338 = vmatprep.subr.mxu0 0.0
      %339 = vmatpush1.msra.mxu0 0.0
      %340 = vmatprep.subr.mxu0 0.0
      %341 = vmatpush1.msra.mxu0 0.0
      %342 = vmatprep.subr.mxu0 0.0
      %343 = vmatpush1.msra.mxu0 0.0
      %344 = vmatprep.subr.mxu0 0.0
      %345 = vmatpush1.msra.mxu0 0.0
      %346 = vmatprep.subr.mxu0 0.0
      %347 = vmatpush1.msra.mxu0 0.0
      %348 = vmatprep.subr.mxu0 0.0
      %349 = vmatpush1.msra.mxu0 0.0
      %350 = vmatprep.subr.mxu0 0.0
      %351 = vmatpush1.msra.mxu0 0.0
      %352 = vmatprep.subr.mxu0 0.0
      %353 = vmatpush1.msra.mxu0 0.0
      %354 = vmatprep.subr.mxu0 0.0
      %355 = vmatpush1.msra.mxu0 0.0
      %356 = vmatprep.subr.mxu0 0.0
      %357 = vmatpush1.msra.mxu0 0.0
      %358 = vmatprep.subr.mxu0 0.0
      %359 = vmatpush1.msra.mxu0 0.0
      %360 = vmatprep.subr.mxu0 %v227
      %361 = vmatpush1.msra.mxu0 %v224
      %362 = vmatprep.subr.mxu0 %v182
      %363 = vmatpush1.msra.mxu0 %v181
      %364 = vmatprep.subr.mxu0 %v178
      %365 = vmatpush1.msra.mxu0 %v177
      %366 = vmatprep.subr.mxu0 %v174
      %367 = vmatpush1.msra.mxu0 %v173
      %368 = vmatprep.subr.mxu0 0.0
      %369 = vmatpush2.msra.mxu0 0.0
      %370 = vmatprep.subr.mxu0 0.0
      %371 = vmatpush2.msra.mxu0 0.0
      %372 = vmatprep.subr.mxu0 0.0
      %373 = vmatpush2.msra.mxu0 0.0
      %374 = vmatprep.subr.mxu0 0.0
      %375 = vmatpush2.msra.mxu0 0.0
      %376 = vmatprep.subr.mxu0 0.0
      %377 = vmatpush2.msra.mxu0 0.0
      %378 = vmatprep.subr.mxu0 0.0
      %379 = vmatpush2.msra.mxu0 0.0
      %380 = vmatprep.subr.mxu0 0.0
      %381 = vmatpush2.msra.mxu0 0.0
      %382 = vmatprep.subr.mxu0 0.0
      %383 = vmatpush2.msra.mxu0 0.0
      %384 = vmatprep.subr.mxu0 0.0
      %385 = vmatpush2.msra.mxu0 0.0
      %386 = vmatprep.subr.mxu0 0.0
      %387 = vmatpush2.msra.mxu0 0.0
      %388 = vmatprep.subr.mxu0 0.0
      %389 = vmatpush2.msra.mxu0 0.0
      %390 = vmatprep.subr.mxu0 0.0
      %391 = vmatpush2.msra.mxu0 0.0
      %392 = vmatprep.subr.mxu0 0.0
      %393 = vmatpush2.msra.mxu0 0.0
      %394 = vmatprep.subr.mxu0 0.0
      %395 = vmatpush2.msra.mxu0 0.0
      %396 = vmatprep.subr.mxu0 0.0
      %397 = vmatpush2.msra.mxu0 0.0
      %398 = vmatprep.subr.mxu0 0.0
      %399 = vmatpush2.msra.mxu0 0.0
      %400 = vmatprep.mubr.f32.mxu0 0.0
      %401 = vmatmul.mubr.f32.gmra.mxu0 %v196
      %v402 = vpop.f32.mrf.mxu0
      %v403 = vadd.f32 0.0, %v402
      %v404 = vpop.f32.mrf.mxu0
      %v405 = vadd.f32 0.0, %v404
      %406 = vmatprep.mubr.f32.mxu0 0.0
      %407 = vmatmul.mubr.f32.gmra.mxu0 %v199
      %v408 = vpop.f32.mrf.mxu0
      %v409 = vadd.f32 0.0, %v408
      %v410 = vpop.f32.mrf.mxu0
      %v411 = vadd.f32 0.0, %v410
      %412 = vmatprep.mubr.f32.mxu0 0.0
      %413 = vmatmul.mubr.f32.gmra.mxu0 %v202
      %v414 = vpop.f32.mrf.mxu0
      %v415 = vadd.f32 0.0, %v414
      %v416 = vpop.f32.mrf.mxu0
      %v417 = vadd.f32 0.0, %v416
      %418 = vmatprep.mubr.f32.mxu0 0.0
      %419 = vmatmul.mubr.f32.gmra.mxu0 %v205
      %v420 = vpop.f32.mrf.mxu0
      %v421 = vadd.f32 0.0, %v420
      %v422 = vpop.f32.mrf.mxu0
      %v423 = vadd.f32 0.0, %v422
      %424 = vmatprep.mubr.f32.mxu0 0.0
      %425 = vmatmul.mubr.f32.gmra.mxu0 %v208
      %v426 = vpop.f32.mrf.mxu0
      %v427 = vadd.f32 0.0, %v426
      %v428 = vpop.f32.mrf.mxu0
      %v429 = vadd.f32 0.0, %v428
      %430 = vmatprep.mubr.f32.mxu0 0.0
      %431 = vmatmul.mubr.f32.gmra.mxu0 %v211
      %v432 = vpop.f32.mrf.mxu0
      %v433 = vadd.f32 0.0, %v432
      %v434 = vpop.f32.mrf.mxu0
      %v435 = vadd.f32 0.0, %v434
      %436 = vmatprep.mubr.f32.mxu0 0.0
      %437 = vmatmul.mubr.f32.gmra.mxu0 %v214
      %v438 = vpop.f32.mrf.mxu0
      %v439 = vadd.f32 0.0, %v438
      %v440 = vpop.f32.mrf.mxu0
      %v441 = vadd.f32 0.0, %v440
      %442 = vdwg.mxu0
      %s443 = scalar_lea.vmem %s165, 56
      %v444 = vld [vmem:[%s443] sm:$0xff]
      %v445 = vld [vmem:[%s443 + $0x8] sm:$0xff]
      %v446 = vld [vmem:[%s443 + $0x10] sm:$0xff]
      %v447 = vld [vmem:[%s443 + $0x18] sm:$0xff]
      %v448 = vld [vmem:[%s443 + $0x20] sm:$0xff]
      %v449 = vld [vmem:[%s443 + $0x28] sm:$0xff]
      %v450 = vld [vmem:[%s443 + $0x30] sm:$0x1]
      %v452 = vsel %vm194, %v444, 0
      %v455 = vsel %vm194, %v445, 0
      %v458 = vsel %vm194, %v446, 0
      %v461 = vsel %vm194, %v447, 0
      %v464 = vsel %vm194, %v448, 0
      %v467 = vsel %vm194, %v449, 0
      %v470 = vsel %vm194, %v450, 0
      %472 = vmatprep.subr.mxu0 0.0
      %473 = vmatpush1.msra.mxu0 0.0
      %474 = vmatprep.subr.mxu0 0.0
      %475 = vmatpush1.msra.mxu0 0.0
      %476 = vmatprep.subr.mxu0 0.0
      %477 = vmatpush1.msra.mxu0 0.0
      %478 = vmatprep.subr.mxu0 0.0
      %479 = vmatpush1.msra.mxu0 0.0
      %480 = vmatprep.subr.mxu0 0.0
      %481 = vmatpush1.msra.mxu0 0.0
      %482 = vmatprep.subr.mxu0 0.0
      %483 = vmatpush1.msra.mxu0 0.0
      %484 = vmatprep.subr.mxu0 0.0
      %485 = vmatpush1.msra.mxu0 0.0
      %486 = vmatprep.subr.mxu0 0.0
      %487 = vmatpush1.msra.mxu0 0.0
      %488 = vmatprep.subr.mxu0 0.0
      %489 = vmatpush1.msra.mxu0 0.0
      %490 = vmatprep.subr.mxu0 0.0
      %491 = vmatpush1.msra.mxu0 0.0
      %492 = vmatprep.subr.mxu0 0.0
      %493 = vmatpush1.msra.mxu0 0.0
      %494 = vmatprep.subr.mxu0 0.0
      %495 = vmatpush1.msra.mxu0 0.0
      %496 = vmatprep.subr.mxu0 %v221
      %497 = vmatpush1.msra.mxu0 %v218
      %498 = vmatprep.subr.mxu0 %v180
      %499 = vmatpush1.msra.mxu0 %v179
      %500 = vmatprep.subr.mxu0 %v176
      %501 = vmatpush1.msra.mxu0 %v175
      %502 = vmatprep.subr.mxu0 %v172
      %503 = vmatpush1.msra.mxu0 %v171
      %504 = vmatprep.subr.mxu0 0.0
      %505 = vmatpush2.msra.mxu0 0.0
      %506 = vmatprep.subr.mxu0 0.0
      %507 = vmatpush2.msra.mxu0 0.0
      %508 = vmatprep.subr.mxu0 0.0
      %509 = vmatpush2.msra.mxu0 0.0
      %510 = vmatprep.subr.mxu0 0.0
      %511 = vmatpush2.msra.mxu0 0.0
      %512 = vmatprep.subr.mxu0 0.0
      %513 = vmatpush2.msra.mxu0 0.0
      %514 = vmatprep.subr.mxu0 0.0
      %515 = vmatpush2.msra.mxu0 0.0
      %516 = vmatprep.subr.mxu0 0.0
      %517 = vmatpush2.msra.mxu0 0.0
      %518 = vmatprep.subr.mxu0 0.0
      %519 = vmatpush2.msra.mxu0 0.0
      %520 = vmatprep.subr.mxu0 0.0
      %521 = vmatpush2.msra.mxu0 0.0
      %522 = vmatprep.subr.mxu0 0.0
      %523 = vmatpush2.msra.mxu0 0.0
      %524 = vmatprep.subr.mxu0 0.0
      %525 = vmatpush2.msra.mxu0 0.0
      %526 = vmatprep.subr.mxu0 0.0
      %527 = vmatpush2.msra.mxu0 0.0
      %528 = vmatprep.subr.mxu0 0.0
      %529 = vmatpush2.msra.mxu0 0.0
      %530 = vmatprep.subr.mxu0 0.0
      %531 = vmatpush2.msra.mxu0 0.0
      %532 = vmatprep.subr.mxu0 0.0
      %533 = vmatpush2.msra.mxu0 0.0
      %534 = vmatprep.subr.mxu0 0.0
      %535 = vmatpush2.msra.mxu0 0.0
      %536 = vmatprep.mubr.f32.mxu0 0.0
      %537 = vmatmul.mubr.f32.gmra.mxu0 %v452
      %v538 = vpop.f32.mrf.mxu0
      %v539 = vadd.f32 0.0, %v538
      %v540 = vpop.f32.mrf.mxu0
      %v541 = vadd.f32 0.0, %v540
      %542 = vmatprep.mubr.f32.mxu0 0.0
      %543 = vmatmul.mubr.f32.gmra.mxu0 %v455
      %v544 = vpop.f32.mrf.mxu0
      %v545 = vadd.f32 0.0, %v544
      %v546 = vpop.f32.mrf.mxu0
      %v547 = vadd.f32 0.0, %v546
      %548 = vmatprep.mubr.f32.mxu0 0.0
      %549 = vmatmul.mubr.f32.gmra.mxu0 %v458
      %v550 = vpop.f32.mrf.mxu0
      %v551 = vadd.f32 0.0, %v550
      %v552 = vpop.f32.mrf.mxu0
      %v553 = vadd.f32 0.0, %v552
      %554 = vmatprep.mubr.f32.mxu0 0.0
      %555 = vmatmul.mubr.f32.gmra.mxu0 %v461
      %v556 = vpop.f32.mrf.mxu0
      %v557 = vadd.f32 0.0, %v556
      %v558 = vpop.f32.mrf.mxu0
      %v559 = vadd.f32 0.0, %v558
      %560 = vmatprep.mubr.f32.mxu0 0.0
      %561 = vmatmul.mubr.f32.gmra.mxu0 %v464
      %v562 = vpop.f32.mrf.mxu0
      %v563 = vadd.f32 0.0, %v562
      %v564 = vpop.f32.mrf.mxu0
      %v565 = vadd.f32 0.0, %v564
      %566 = vmatprep.mubr.f32.mxu0 0.0
      %567 = vmatmul.mubr.f32.gmra.mxu0 %v467
      %v568 = vpop.f32.mrf.mxu0
      %v569 = vadd.f32 0.0, %v568
      %v570 = vpop.f32.mrf.mxu0
      %v571 = vadd.f32 0.0, %v570
      %572 = vmatprep.mubr.f32.mxu0 0.0
      %573 = vmatmul.mubr.f32.gmra.mxu0 %v470
      %v574 = vpop.f32.mrf.mxu0
      %v575 = vadd.f32 0.0, %v574
      %v576 = vpop.f32.mrf.mxu0
      %v577 = vadd.f32 0.0, %v576
      %578 = vdwg.mxu0
      %579 = vmatprep.subr.mxu0 0.0
      %580 = vmatpush1.msra.mxu0 0.0
      %581 = vmatprep.subr.mxu0 0.0
      %582 = vmatpush1.msra.mxu0 0.0
      %583 = vmatprep.subr.mxu0 0.0
      %584 = vmatpush1.msra.mxu0 0.0
      %585 = vmatprep.subr.mxu0 0.0
      %586 = vmatpush1.msra.mxu0 0.0
      %587 = vmatprep.subr.mxu0 0.0
      %588 = vmatpush1.msra.mxu0 0.0
      %589 = vmatprep.subr.mxu0 0.0
      %590 = vmatpush1.msra.mxu0 0.0
      %591 = vmatprep.subr.mxu0 0.0
      %592 = vmatpush1.msra.mxu0 0.0
      %593 = vmatprep.subr.mxu0 0.0
      %594 = vmatpush1.msra.mxu0 0.0
      %595 = vmatprep.subr.mxu0 0.0
      %596 = vmatpush1.msra.mxu0 0.0
      %597 = vmatprep.subr.mxu0 0.0
      %598 = vmatpush1.msra.mxu0 0.0
      %599 = vmatprep.subr.mxu0 0.0
      %600 = vmatpush1.msra.mxu0 0.0
      %601 = vmatprep.subr.mxu0 0.0
      %602 = vmatpush1.msra.mxu0 0.0
      %603 = vmatprep.subr.mxu0 %v227
      %604 = vmatpush1.msra.mxu0 %v224
      %605 = vmatprep.subr.mxu0 %v182
      %606 = vmatpush1.msra.mxu0 %v181
      %607 = vmatprep.subr.mxu0 %v178
      %608 = vmatpush1.msra.mxu0 %v177
      %609 = vmatprep.subr.mxu0 %v174
      %610 = vmatpush1.msra.mxu0 %v173
      %611 = vmatprep.subr.mxu0 0.0
      %612 = vmatpush2.msra.mxu0 0.0
      %613 = vmatprep.subr.mxu0 0.0
      %614 = vmatpush2.msra.mxu0 0.0
      %615 = vmatprep.subr.mxu0 0.0
      %616 = vmatpush2.msra.mxu0 0.0
      %617 = vmatprep.subr.mxu0 0.0
      %618 = vmatpush2.msra.mxu0 0.0
      %619 = vmatprep.subr.mxu0 0.0
      %620 = vmatpush2.msra.mxu0 0.0
      %621 = vmatprep.subr.mxu0 0.0
      %622 = vmatpush2.msra.mxu0 0.0
      %623 = vmatprep.subr.mxu0 0.0
      %624 = vmatpush2.msra.mxu0 0.0
      %625 = vmatprep.subr.mxu0 0.0
      %626 = vmatpush2.msra.mxu0 0.0
      %627 = vmatprep.subr.mxu0 0.0
      %628 = vmatpush2.msra.mxu0 0.0
      %629 = vmatprep.subr.mxu0 0.0
      %630 = vmatpush2.msra.mxu0 0.0
      %631 = vmatprep.subr.mxu0 0.0
      %632 = vmatpush2.msra.mxu0 0.0
      %633 = vmatprep.subr.mxu0 0.0
      %634 = vmatpush2.msra.mxu0 0.0
      %635 = vmatprep.subr.mxu0 0.0
      %636 = vmatpush2.msra.mxu0 0.0
      %637 = vmatprep.subr.mxu0 0.0
      %638 = vmatpush2.msra.mxu0 0.0
      %639 = vmatprep.subr.mxu0 0.0
      %640 = vmatpush2.msra.mxu0 0.0
      %641 = vmatprep.subr.mxu0 0.0
      %642 = vmatpush2.msra.mxu0 0.0
      %643 = vmatprep.mubr.f32.mxu0 0.0
      %644 = vmatmul.mubr.f32.gmra.mxu0 %v452
      %v645 = vpop.f32.mrf.mxu0
      %v646 = vadd.f32 0.0, %v645
      %v647 = vpop.f32.mrf.mxu0
      %v648 = vadd.f32 0.0, %v647
      %649 = vmatprep.mubr.f32.mxu0 0.0
      %650 = vmatmul.mubr.f32.gmra.mxu0 %v455
      %v651 = vpop.f32.mrf.mxu0
      %v652 = vadd.f32 0.0, %v651
      %v653 = vpop.f32.mrf.mxu0
      %v654 = vadd.f32 0.0, %v653
      %655 = vmatprep.mubr.f32.mxu0 0.0
      %656 = vmatmul.mubr.f32.gmra.mxu0 %v458
      %v657 = vpop.f32.mrf.mxu0
      %v658 = vadd.f32 0.0, %v657
      %v659 = vpop.f32.mrf.mxu0
      %v660 = vadd.f32 0.0, %v659
      %661 = vmatprep.mubr.f32.mxu0 0.0
      %662 = vmatmul.mubr.f32.gmra.mxu0 %v461
      %v663 = vpop.f32.mrf.mxu0
      %v664 = vadd.f32 0.0, %v663
      %v665 = vpop.f32.mrf.mxu0
      %v666 = vadd.f32 0.0, %v665
      %667 = vmatprep.mubr.f32.mxu0 0.0
      %668 = vmatmul.mubr.f32.gmra.mxu0 %v464
      %v669 = vpop.f32.mrf.mxu0
      %v670 = vadd.f32 0.0, %v669
      %v671 = vpop.f32.mrf.mxu0
      %v672 = vadd.f32 0.0, %v671
      %673 = vmatprep.mubr.f32.mxu0 0.0
      %674 = vmatmul.mubr.f32.gmra.mxu0 %v467
      %v675 = vpop.f32.mrf.mxu0
      %v676 = vadd.f32 0.0, %v675
      %v677 = vpop.f32.mrf.mxu0
      %v678 = vadd.f32 0.0, %v677
      %679 = vmatprep.mubr.f32.mxu0 0.0
      %680 = vmatmul.mubr.f32.gmra.mxu0 %v470
      %v681 = vpop.f32.mrf.mxu0
      %v682 = vadd.f32 0.0, %v681
      %v683 = vpop.f32.mrf.mxu0
      %v684 = vadd.f32 0.0, %v683
      %685 = vdwg.mxu0
      %v686 = vmax.f32 %v296, %v539
      %v687 = vmax.f32 %v298, %v541
      %v688 = vmax.f32 %v403, %v646
      %v689 = vmax.f32 %v405, %v648
      %v690 = vmax.f32 %v302, %v545
      %v691 = vmax.f32 %v304, %v547
      %v692 = vmax.f32 %v409, %v652
      %v693 = vmax.f32 %v411, %v654
      %v694 = vmax.f32 %v308, %v551
      %v695 = vmax.f32 %v310, %v553
      %v696 = vmax.f32 %v415, %v658
      %v697 = vmax.f32 %v417, %v660
      %v698 = vmax.f32 %v314, %v557
      %v699 = vmax.f32 %v316, %v559
      %v700 = vmax.f32 %v421, %v664
      %v701 = vmax.f32 %v423, %v666
      %v702 = vmax.f32 %v320, %v563
      %v703 = vmax.f32 %v322, %v565
      %v704 = vmax.f32 %v427, %v670
      %v705 = vmax.f32 %v429, %v672
      %v706 = vmax.f32 %v326, %v569
      %v707 = vmax.f32 %v328, %v571
      %v708 = vmax.f32 %v433, %v676
      %v709 = vmax.f32 %v435, %v678
      %v710 = vmax.f32 %v332, %v575
      %v711 = vmax.f32 %v334, %v577
      %v712 = vmax.f32 %v439, %v682
      %v713 = vmax.f32 %v441, %v684
      %s714 = scalar_lea.vmem %s165, 112
      %v715 = vld [vmem:[%s714] sm:$0xff]
      %v716 = vld [vmem:[%s714 + $0x8] sm:$0xff]
      %v717 = vld [vmem:[%s714 + $0x10] sm:$0xff]
      %v718 = vld [vmem:[%s714 + $0x18] sm:$0xff]
      %v719 = vld [vmem:[%s714 + $0x20] sm:$0xff]
      %v720 = vld [vmem:[%s714 + $0x28] sm:$0xff]
      %v721 = vld [vmem:[%s714 + $0x30] sm:$0x1]
      %v723 = vsel %vm194, %v715, 0
      %v726 = vsel %vm194, %v716, 0
      %v729 = vsel %vm194, %v717, 0
      %v732 = vsel %vm194, %v718, 0
      %v735 = vsel %vm194, %v719, 0
      %v738 = vsel %vm194, %v720, 0
      %v741 = vsel %vm194, %v721, 0
      %743 = vmatprep.subr.mxu0 0.0
      %744 = vmatpush1.msra.mxu0 0.0
      %745 = vmatprep.subr.mxu0 0.0
      %746 = vmatpush1.msra.mxu0 0.0
      %747 = vmatprep.subr.mxu0 0.0
      %748 = vmatpush1.msra.mxu0 0.0
      %749 = vmatprep.subr.mxu0 0.0
      %750 = vmatpush1.msra.mxu0 0.0
      %751 = vmatprep.subr.mxu0 0.0
      %752 = vmatpush1.msra.mxu0 0.0
      %753 = vmatprep.subr.mxu0 0.0
      %754 = vmatpush1.msra.mxu0 0.0
      %755 = vmatprep.subr.mxu0 0.0
      %756 = vmatpush1.msra.mxu0 0.0
      %757 = vmatprep.subr.mxu0 0.0
      %758 = vmatpush1.msra.mxu0 0.0
      %759 = vmatprep.subr.mxu0 0.0
      %760 = vmatpush1.msra.mxu0 0.0
      %761 = vmatprep.subr.mxu0 0.0
      %762 = vmatpush1.msra.mxu0 0.0
      %763 = vmatprep.subr.mxu0 0.0
      %764 = vmatpush1.msra.mxu0 0.0
      %765 = vmatprep.subr.mxu0 0.0
      %766 = vmatpush1.msra.mxu0 0.0
      %767 = vmatprep.subr.mxu0 %v221
      %768 = vmatpush1.msra.mxu0 %v218
      %769 = vmatprep.subr.mxu0 %v180
      %770 = vmatpush1.msra.mxu0 %v179
      %771 = vmatprep.subr.mxu0 %v176
      %772 = vmatpush1.msra.mxu0 %v175
      %773 = vmatprep.subr.mxu0 %v172
      %774 = vmatpush1.msra.mxu0 %v171
      %775 = vmatprep.subr.mxu0 0.0
      %776 = vmatpush2.msra.mxu0 0.0
      %777 = vmatprep.subr.mxu0 0.0
      %778 = vmatpush2.msra.mxu0 0.0
      %779 = vmatprep.subr.mxu0 0.0
      %780 = vmatpush2.msra.mxu0 0.0
      %781 = vmatprep.subr.mxu0 0.0
      %782 = vmatpush2.msra.mxu0 0.0
      %783 = vmatprep.subr.mxu0 0.0
      %784 = vmatpush2.msra.mxu0 0.0
      %785 = vmatprep.subr.mxu0 0.0
      %786 = vmatpush2.msra.mxu0 0.0
      %787 = vmatprep.subr.mxu0 0.0
      %788 = vmatpush2.msra.mxu0 0.0
      %789 = vmatprep.subr.mxu0 0.0
      %790 = vmatpush2.msra.mxu0 0.0
      %791 = vmatprep.subr.mxu0 0.0
      %792 = vmatpush2.msra.mxu0 0.0
      %793 = vmatprep.subr.mxu0 0.0
      %794 = vmatpush2.msra.mxu0 0.0
      %795 = vmatprep.subr.mxu0 0.0
      %796 = vmatpush2.msra.mxu0 0.0
      %797 = vmatprep.subr.mxu0 0.0
      %798 = vmatpush2.msra.mxu0 0.0
      %799 = vmatprep.subr.mxu0 0.0
      %800 = vmatpush2.msra.mxu0 0.0
      %801 = vmatprep.subr.mxu0 0.0
      %802 = vmatpush2.msra.mxu0 0.0
      %803 = vmatprep.subr.mxu0 0.0
      %804 = vmatpush2.msra.mxu0 0.0
      %805 = vmatprep.subr.mxu0 0.0
      %806 = vmatpush2.msra.mxu0 0.0
      %807 = vmatprep.mubr.f32.mxu0 0.0
      %808 = vmatmul.mubr.f32.gmra.mxu0 %v723
      %v809 = vpop.f32.mrf.mxu0
      %v810 = vadd.f32 0.0, %v809
      %v811 = vpop.f32.mrf.mxu0
      %v812 = vadd.f32 0.0, %v811
      %813 = vmatprep.mubr.f32.mxu0 0.0
      %814 = vmatmul.mubr.f32.gmra.mxu0 %v726
      %v815 = vpop.f32.mrf.mxu0
      %v816 = vadd.f32 0.0, %v815
      %v817 = vpop.f32.mrf.mxu0
      %v818 = vadd.f32 0.0, %v817
      %819 = vmatprep.mubr.f32.mxu0 0.0
      %820 = vmatmul.mubr.f32.gmra.mxu0 %v729
      %v821 = vpop.f32.mrf.mxu0
      %v822 = vadd.f32 0.0, %v821
      %v823 = vpop.f32.mrf.mxu0
      %v824 = vadd.f32 0.0, %v823
      %825 = vmatprep.mubr.f32.mxu0 0.0
      %826 = vmatmul.mubr.f32.gmra.mxu0 %v732
      %v827 = vpop.f32.mrf.mxu0
      %v828 = vadd.f32 0.0, %v827
      %v829 = vpop.f32.mrf.mxu0
      %v830 = vadd.f32 0.0, %v829
      %831 = vmatprep.mubr.f32.mxu0 0.0
      %832 = vmatmul.mubr.f32.gmra.mxu0 %v735
      %v833 = vpop.f32.mrf.mxu0
      %v834 = vadd.f32 0.0, %v833
      %v835 = vpop.f32.mrf.mxu0
      %v836 = vadd.f32 0.0, %v835
      %837 = vmatprep.mubr.f32.mxu0 0.0
      %838 = vmatmul.mubr.f32.gmra.mxu0 %v738
      %v839 = vpop.f32.mrf.mxu0
      %v840 = vadd.f32 0.0, %v839
      %v841 = vpop.f32.mrf.mxu0
      %v842 = vadd.f32 0.0, %v841
      %843 = vmatprep.mubr.f32.mxu0 0.0
      %844 = vmatmul.mubr.f32.gmra.mxu0 %v741
      %v845 = vpop.f32.mrf.mxu0
      %v846 = vadd.f32 0.0, %v845
      %v847 = vpop.f32.mrf.mxu0
      %v848 = vadd.f32 0.0, %v847
      %849 = vdwg.mxu0
      %850 = vmatprep.subr.mxu0 0.0
      %851 = vmatpush1.msra.mxu0 0.0
      %852 = vmatprep.subr.mxu0 0.0
      %853 = vmatpush1.msra.mxu0 0.0
      %854 = vmatprep.subr.mxu0 0.0
      %855 = vmatpush1.msra.mxu0 0.0
      %856 = vmatprep.subr.mxu0 0.0
      %857 = vmatpush1.msra.mxu0 0.0
      %858 = vmatprep.subr.mxu0 0.0
      %859 = vmatpush1.msra.mxu0 0.0
      %860 = vmatprep.subr.mxu0 0.0
      %861 = vmatpush1.msra.mxu0 0.0
      %862 = vmatprep.subr.mxu0 0.0
      %863 = vmatpush1.msra.mxu0 0.0
      %864 = vmatprep.subr.mxu0 0.0
      %865 = vmatpush1.msra.mxu0 0.0
      %866 = vmatprep.subr.mxu0 0.0
      %867 = vmatpush1.msra.mxu0 0.0
      %868 = vmatprep.subr.mxu0 0.0
      %869 = vmatpush1.msra.mxu0 0.0
      %870 = vmatprep.subr.mxu0 0.0
      %871 = vmatpush1.msra.mxu0 0.0
      %872 = vmatprep.subr.mxu0 0.0
      %873 = vmatpush1.msra.mxu0 0.0
      %874 = vmatprep.subr.mxu0 %v227
      %875 = vmatpush1.msra.mxu0 %v224
      %876 = vmatprep.subr.mxu0 %v182
      %877 = vmatpush1.msra.mxu0 %v181
      %878 = vmatprep.subr.mxu0 %v178
      %879 = vmatpush1.msra.mxu0 %v177
      %880 = vmatprep.subr.mxu0 %v174
      %881 = vmatpush1.msra.mxu0 %v173
      %882 = vmatprep.subr.mxu0 0.0
      %883 = vmatpush2.msra.mxu0 0.0
      %884 = vmatprep.subr.mxu0 0.0
      %885 = vmatpush2.msra.mxu0 0.0
      %886 = vmatprep.subr.mxu0 0.0
      %887 = vmatpush2.msra.mxu0 0.0
      %888 = vmatprep.subr.mxu0 0.0
      %889 = vmatpush2.msra.mxu0 0.0
      %890 = vmatprep.subr.mxu0 0.0
      %891 = vmatpush2.msra.mxu0 0.0
      %892 = vmatprep.subr.mxu0 0.0
      %893 = vmatpush2.msra.mxu0 0.0
      %894 = vmatprep.subr.mxu0 0.0
      %895 = vmatpush2.msra.mxu0 0.0
      %896 = vmatprep.subr.mxu0 0.0
      %897 = vmatpush2.msra.mxu0 0.0
      %898 = vmatprep.subr.mxu0 0.0
      %899 = vmatpush2.msra.mxu0 0.0
      %900 = vmatprep.subr.mxu0 0.0
      %901 = vmatpush2.msra.mxu0 0.0
      %902 = vmatprep.subr.mxu0 0.0
      %903 = vmatpush2.msra.mxu0 0.0
      %904 = vmatprep.subr.mxu0 0.0
      %905 = vmatpush2.msra.mxu0 0.0
      %906 = vmatprep.subr.mxu0 0.0
      %907 = vmatpush2.msra.mxu0 0.0
      %908 = vmatprep.subr.mxu0 0.0
      %909 = vmatpush2.msra.mxu0 0.0
      %910 = vmatprep.subr.mxu0 0.0
      %911 = vmatpush2.msra.mxu0 0.0
      %912 = vmatprep.subr.mxu0 0.0
      %913 = vmatpush2.msra.mxu0 0.0
      %914 = vmatprep.mubr.f32.mxu0 0.0
      %915 = vmatmul.mubr.f32.gmra.mxu0 %v723
      %v916 = vpop.f32.mrf.mxu0
      %v917 = vadd.f32 0.0, %v916
      %v918 = vpop.f32.mrf.mxu0
      %v919 = vadd.f32 0.0, %v918
      %920 = vmatprep.mubr.f32.mxu0 0.0
      %921 = vmatmul.mubr.f32.gmra.mxu0 %v726
      %v922 = vpop.f32.mrf.mxu0
      %v923 = vadd.f32 0.0, %v922
      %v924 = vpop.f32.mrf.mxu0
      %v925 = vadd.f32 0.0, %v924
      %926 = vmatprep.mubr.f32.mxu0 0.0
      %927 = vmatmul.mubr.f32.gmra.mxu0 %v729
      %v928 = vpop.f32.mrf.mxu0
      %v929 = vadd.f32 0.0, %v928
      %v930 = vpop.f32.mrf.mxu0
      %v931 = vadd.f32 0.0, %v930
      %932 = vmatprep.mubr.f32.mxu0 0.0
      %933 = vmatmul.mubr.f32.gmra.mxu0 %v732
      %v934 = vpop.f32.mrf.mxu0
      %v935 = vadd.f32 0.0, %v934
      %v936 = vpop.f32.mrf.mxu0
      %v937 = vadd.f32 0.0, %v936
      %938 = vmatprep.mubr.f32.mxu0 0.0
      %939 = vmatmul.mubr.f32.gmra.mxu0 %v735
      %v940 = vpop.f32.mrf.mxu0
      %v941 = vadd.f32 0.0, %v940
      %v942 = vpop.f32.mrf.mxu0
      %v943 = vadd.f32 0.0, %v942
      %944 = vmatprep.mubr.f32.mxu0 0.0
      %945 = vmatmul.mubr.f32.gmra.mxu0 %v738
      %v946 = vpop.f32.mrf.mxu0
      %v947 = vadd.f32 0.0, %v946
      %v948 = vpop.f32.mrf.mxu0
      %v949 = vadd.f32 0.0, %v948
      %950 = vmatprep.mubr.f32.mxu0 0.0
      %951 = vmatmul.mubr.f32.gmra.mxu0 %v741
      %v952 = vpop.f32.mrf.mxu0
      %v953 = vadd.f32 0.0, %v952
      %v954 = vpop.f32.mrf.mxu0
      %v955 = vadd.f32 0.0, %v954
      %956 = vdwg.mxu0
      %v957 = vmax.f32 %v686, %v810
      %v958 = vmax.f32 %v687, %v812
      %v959 = vmax.f32 %v688, %v917
      %v960 = vmax.f32 %v689, %v919
      %v961 = vmax.f32 %v690, %v816
      %v962 = vmax.f32 %v691, %v818
      %v963 = vmax.f32 %v692, %v923
      %v964 = vmax.f32 %v693, %v925
      %v965 = vmax.f32 %v694, %v822
      %v966 = vmax.f32 %v695, %v824
      %v967 = vmax.f32 %v696, %v929
      %v968 = vmax.f32 %v697, %v931
      %v969 = vmax.f32 %v698, %v828
      %v970 = vmax.f32 %v699, %v830
      %v971 = vmax.f32 %v700, %v935
      %v972 = vmax.f32 %v701, %v937
      %v973 = vmax.f32 %v702, %v834
      %v974 = vmax.f32 %v703, %v836
      %v975 = vmax.f32 %v704, %v941
      %v976 = vmax.f32 %v705, %v943
      %v977 = vmax.f32 %v706, %v840
      %v978 = vmax.f32 %v707, %v842
      %v979 = vmax.f32 %v708, %v947
      %v980 = vmax.f32 %v709, %v949
      %v981 = vmax.f32 %v710, %v846
      %v982 = vmax.f32 %v711, %v848
      %v983 = vmax.f32 %v712, %v953
      %v984 = vmax.f32 %v713, %v955
      %s985 = scalar_lea.vmem %s165, 168
      %v986 = vld [vmem:[%s985] sm:$0xff]
      %v987 = vld [vmem:[%s985 + $0x8] sm:$0xff]
      %v988 = vld [vmem:[%s985 + $0x10] sm:$0xff]
      %v989 = vld [vmem:[%s985 + $0x18] sm:$0xff]
      %v990 = vld [vmem:[%s985 + $0x20] sm:$0xff]
      %v991 = vld [vmem:[%s985 + $0x28] sm:$0xff]
      %v992 = vld [vmem:[%s985 + $0x30] sm:$0x1]
      %v994 = vsel %vm194, %v986, 0
      %v997 = vsel %vm194, %v987, 0
      %v1000 = vsel %vm194, %v988, 0
      %v1003 = vsel %vm194, %v989, 0
      %v1006 = vsel %vm194, %v990, 0
      %v1009 = vsel %vm194, %v991, 0
      %v1012 = vsel %vm194, %v992, 0
      %1014 = vmatprep.subr.mxu0 0.0
      %1015 = vmatpush1.msra.mxu0 0.0
      %1016 = vmatprep.subr.mxu0 0.0
      %1017 = vmatpush1.msra.mxu0 0.0
      %1018 = vmatprep.subr.mxu0 0.0
      %1019 = vmatpush1.msra.mxu0 0.0
      %1020 = vmatprep.subr.mxu0 0.0
      %1021 = vmatpush1.msra.mxu0 0.0
      %1022 = vmatprep.subr.mxu0 0.0
      %1023 = vmatpush1.msra.mxu0 0.0
      %1024 = vmatprep.subr.mxu0 0.0
      %1025 = vmatpush1.msra.mxu0 0.0
      %1026 = vmatprep.subr.mxu0 0.0
      %1027 = vmatpush1.msra.mxu0 0.0
      %1028 = vmatprep.subr.mxu0 0.0
      %1029 = vmatpush1.msra.mxu0 0.0
      %1030 = vmatprep.subr.mxu0 0.0
      %1031 = vmatpush1.msra.mxu0 0.0
      %1032 = vmatprep.subr.mxu0 0.0
      %1033 = vmatpush1.msra.mxu0 0.0
      %1034 = vmatprep.subr.mxu0 0.0
      %1035 = vmatpush1.msra.mxu0 0.0
      %1036 = vmatprep.subr.mxu0 0.0
      %1037 = vmatpush1.msra.mxu0 0.0
      %1038 = vmatprep.subr.mxu0 %v221
      %1039 = vmatpush1.msra.mxu0 %v218
      %1040 = vmatprep.subr.mxu0 %v180
      %1041 = vmatpush1.msra.mxu0 %v179
      %1042 = vmatprep.subr.mxu0 %v176
      %1043 = vmatpush1.msra.mxu0 %v175
      %1044 = vmatprep.subr.mxu0 %v172
      %1045 = vmatpush1.msra.mxu0 %v171
      %1046 = vmatprep.subr.mxu0 0.0
      %1047 = vmatpush2.msra.mxu0 0.0
      %1048 = vmatprep.subr.mxu0 0.0
      %1049 = vmatpush2.msra.mxu0 0.0
      %1050 = vmatprep.subr.mxu0 0.0
      %1051 = vmatpush2.msra.mxu0 0.0
      %1052 = vmatprep.subr.mxu0 0.0
      %1053 = vmatpush2.msra.mxu0 0.0
      %1054 = vmatprep.subr.mxu0 0.0
      %1055 = vmatpush2.msra.mxu0 0.0
      %1056 = vmatprep.subr.mxu0 0.0
      %1057 = vmatpush2.msra.mxu0 0.0
      %1058 = vmatprep.subr.mxu0 0.0
      %1059 = vmatpush2.msra.mxu0 0.0
      %1060 = vmatprep.subr.mxu0 0.0
      %1061 = vmatpush2.msra.mxu0 0.0
      %1062 = vmatprep.subr.mxu0 0.0
      %1063 = vmatpush2.msra.mxu0 0.0
      %1064 = vmatprep.subr.mxu0 0.0
      %1065 = vmatpush2.msra.mxu0 0.0
      %1066 = vmatprep.subr.mxu0 0.0
      %1067 = vmatpush2.msra.mxu0 0.0
      %1068 = vmatprep.subr.mxu0 0.0
      %1069 = vmatpush2.msra.mxu0 0.0
      %1070 = vmatprep.subr.mxu0 0.0
      %1071 = vmatpush2.msra.mxu0 0.0
      %1072 = vmatprep.subr.mxu0 0.0
      %1073 = vmatpush2.msra.mxu0 0.0
      %1074 = vmatprep.subr.mxu0 0.0
      %1075 = vmatpush2.msra.mxu0 0.0
      %1076 = vmatprep.subr.mxu0 0.0
      %1077 = vmatpush2.msra.mxu0 0.0
      %1078 = vmatprep.mubr.f32.mxu0 0.0
      %1079 = vmatmul.mubr.f32.gmra.mxu0 %v994
      %v1080 = vpop.f32.mrf.mxu0
      %v1081 = vadd.f32 0.0, %v1080
      %v1082 = vpop.f32.mrf.mxu0
      %v1083 = vadd.f32 0.0, %v1082
      %1084 = vmatprep.mubr.f32.mxu0 0.0
      %1085 = vmatmul.mubr.f32.gmra.mxu0 %v997
      %v1086 = vpop.f32.mrf.mxu0
      %v1087 = vadd.f32 0.0, %v1086
      %v1088 = vpop.f32.mrf.mxu0
      %v1089 = vadd.f32 0.0, %v1088
      %1090 = vmatprep.mubr.f32.mxu0 0.0
      %1091 = vmatmul.mubr.f32.gmra.mxu0 %v1000
      %v1092 = vpop.f32.mrf.mxu0
      %v1093 = vadd.f32 0.0, %v1092
      %v1094 = vpop.f32.mrf.mxu0
      %v1095 = vadd.f32 0.0, %v1094
      %1096 = vmatprep.mubr.f32.mxu0 0.0
      %1097 = vmatmul.mubr.f32.gmra.mxu0 %v1003
      %v1098 = vpop.f32.mrf.mxu0
      %v1099 = vadd.f32 0.0, %v1098
      %v1100 = vpop.f32.mrf.mxu0
      %v1101 = vadd.f32 0.0, %v1100
      %1102 = vmatprep.mubr.f32.mxu0 0.0
      %1103 = vmatmul.mubr.f32.gmra.mxu0 %v1006
      %v1104 = vpop.f32.mrf.mxu0
      %v1105 = vadd.f32 0.0, %v1104
      %v1106 = vpop.f32.mrf.mxu0
      %v1107 = vadd.f32 0.0, %v1106
      %1108 = vmatprep.mubr.f32.mxu0 0.0
      %1109 = vmatmul.mubr.f32.gmra.mxu0 %v1009
      %v1110 = vpop.f32.mrf.mxu0
      %v1111 = vadd.f32 0.0, %v1110
      %v1112 = vpop.f32.mrf.mxu0
      %v1113 = vadd.f32 0.0, %v1112
      %1114 = vmatprep.mubr.f32.mxu0 0.0
      %1115 = vmatmul.mubr.f32.gmra.mxu0 %v1012
      %v1116 = vpop.f32.mrf.mxu0
      %v1117 = vadd.f32 0.0, %v1116
      %v1118 = vpop.f32.mrf.mxu0
      %v1119 = vadd.f32 0.0, %v1118
      %1120 = vdwg.mxu0
      %1121 = vmatprep.subr.mxu0 0.0
      %1122 = vmatpush1.msra.mxu0 0.0
      %1123 = vmatprep.subr.mxu0 0.0
      %1124 = vmatpush1.msra.mxu0 0.0
      %1125 = vmatprep.subr.mxu0 0.0
      %1126 = vmatpush1.msra.mxu0 0.0
      %1127 = vmatprep.subr.mxu0 0.0
      %1128 = vmatpush1.msra.mxu0 0.0
      %1129 = vmatprep.subr.mxu0 0.0
      %1130 = vmatpush1.msra.mxu0 0.0
      %1131 = vmatprep.subr.mxu0 0.0
      %1132 = vmatpush1.msra.mxu0 0.0
      %1133 = vmatprep.subr.mxu0 0.0
      %1134 = vmatpush1.msra.mxu0 0.0
      %1135 = vmatprep.subr.mxu0 0.0
      %1136 = vmatpush1.msra.mxu0 0.0
      %1137 = vmatprep.subr.mxu0 0.0
      %1138 = vmatpush1.msra.mxu0 0.0
      %1139 = vmatprep.subr.mxu0 0.0
      %1140 = vmatpush1.msra.mxu0 0.0
      %1141 = vmatprep.subr.mxu0 0.0
      %1142 = vmatpush1.msra.mxu0 0.0
      %1143 = vmatprep.subr.mxu0 0.0
      %1144 = vmatpush1.msra.mxu0 0.0
      %1145 = vmatprep.subr.mxu0 %v227
      %1146 = vmatpush1.msra.mxu0 %v224
      %1147 = vmatprep.subr.mxu0 %v182
      %1148 = vmatpush1.msra.mxu0 %v181
      %1149 = vmatprep.subr.mxu0 %v178
      %1150 = vmatpush1.msra.mxu0 %v177
      %1151 = vmatprep.subr.mxu0 %v174
      %1152 = vmatpush1.msra.mxu0 %v173
      %1153 = vmatprep.subr.mxu0 0.0
      %1154 = vmatpush2.msra.mxu0 0.0
      %1155 = vmatprep.subr.mxu0 0.0
      %1156 = vmatpush2.msra.mxu0 0.0
      %1157 = vmatprep.subr.mxu0 0.0
      %1158 = vmatpush2.msra.mxu0 0.0
      %1159 = vmatprep.subr.mxu0 0.0
      %1160 = vmatpush2.msra.mxu0 0.0
      %1161 = vmatprep.subr.mxu0 0.0
      %1162 = vmatpush2.msra.mxu0 0.0
      %1163 = vmatprep.subr.mxu0 0.0
      %1164 = vmatpush2.msra.mxu0 0.0
      %1165 = vmatprep.subr.mxu0 0.0
      %1166 = vmatpush2.msra.mxu0 0.0
      %1167 = vmatprep.subr.mxu0 0.0
      %1168 = vmatpush2.msra.mxu0 0.0
      %1169 = vmatprep.subr.mxu0 0.0
      %1170 = vmatpush2.msra.mxu0 0.0
      %1171 = vmatprep.subr.mxu0 0.0
      %1172 = vmatpush2.msra.mxu0 0.0
      %1173 = vmatprep.subr.mxu0 0.0
      %1174 = vmatpush2.msra.mxu0 0.0
      %1175 = vmatprep.subr.mxu0 0.0
      %1176 = vmatpush2.msra.mxu0 0.0
      %1177 = vmatprep.subr.mxu0 0.0
      %1178 = vmatpush2.msra.mxu0 0.0
      %1179 = vmatprep.subr.mxu0 0.0
      %1180 = vmatpush2.msra.mxu0 0.0
      %1181 = vmatprep.subr.mxu0 0.0
      %1182 = vmatpush2.msra.mxu0 0.0
      %1183 = vmatprep.subr.mxu0 0.0
      %1184 = vmatpush2.msra.mxu0 0.0
      %1185 = vmatprep.mubr.f32.mxu0 0.0
      %1186 = vmatmul.mubr.f32.gmra.mxu0 %v994
      %v1187 = vpop.f32.mrf.mxu0
      %v1188 = vadd.f32 0.0, %v1187
      %v1189 = vpop.f32.mrf.mxu0
      %v1190 = vadd.f32 0.0, %v1189
      %1191 = vmatprep.mubr.f32.mxu0 0.0
      %1192 = vmatmul.mubr.f32.gmra.mxu0 %v997
      %v1193 = vpop.f32.mrf.mxu0
      %v1194 = vadd.f32 0.0, %v1193
      %v1195 = vpop.f32.mrf.mxu0
      %v1196 = vadd.f32 0.0, %v1195
      %1197 = vmatprep.mubr.f32.mxu0 0.0
      %1198 = vmatmul.mubr.f32.gmra.mxu0 %v1000
      %v1199 = vpop.f32.mrf.mxu0
      %v1200 = vadd.f32 0.0, %v1199
      %v1201 = vpop.f32.mrf.mxu0
      %v1202 = vadd.f32 0.0, %v1201
      %1203 = vmatprep.mubr.f32.mxu0 0.0
      %1204 = vmatmul.mubr.f32.gmra.mxu0 %v1003
      %v1205 = vpop.f32.mrf.mxu0
      %v1206 = vadd.f32 0.0, %v1205
      %v1207 = vpop.f32.mrf.mxu0
      %v1208 = vadd.f32 0.0, %v1207
      %1209 = vmatprep.mubr.f32.mxu0 0.0
      %1210 = vmatmul.mubr.f32.gmra.mxu0 %v1006
      %v1211 = vpop.f32.mrf.mxu0
      %v1212 = vadd.f32 0.0, %v1211
      %v1213 = vpop.f32.mrf.mxu0
      %v1214 = vadd.f32 0.0, %v1213
      %1215 = vmatprep.mubr.f32.mxu0 0.0
      %1216 = vmatmul.mubr.f32.gmra.mxu0 %v1009
      %v1217 = vpop.f32.mrf.mxu0
      %v1218 = vadd.f32 0.0, %v1217
      %v1219 = vpop.f32.mrf.mxu0
      %v1220 = vadd.f32 0.0, %v1219
      %1221 = vmatprep.mubr.f32.mxu0 0.0
      %1222 = vmatmul.mubr.f32.gmra.mxu0 %v1012
      %v1223 = vpop.f32.mrf.mxu0
      %v1224 = vadd.f32 0.0, %v1223
      %v1225 = vpop.f32.mrf.mxu0
      %v1226 = vadd.f32 0.0, %v1225
      %1227 = vdwg.mxu0
      %v1228 = vmax.f32 %v957, %v1081
      %v1229 = vmax.f32 %v958, %v1083
      %v1230 = vmax.f32 %v959, %v1188
      %v1231 = vmax.f32 %v960, %v1190
      %v1232 = vmax.f32 %v961, %v1087
      %v1233 = vmax.f32 %v962, %v1089
      %v1234 = vmax.f32 %v963, %v1194
      %v1235 = vmax.f32 %v964, %v1196
      %v1236 = vmax.f32 %v965, %v1093
      %v1237 = vmax.f32 %v966, %v1095
      %v1238 = vmax.f32 %v967, %v1200
      %v1239 = vmax.f32 %v968, %v1202
      %v1240 = vmax.f32 %v969, %v1099
      %v1241 = vmax.f32 %v970, %v1101
      %v1242 = vmax.f32 %v971, %v1206
      %v1243 = vmax.f32 %v972, %v1208
      %v1244 = vmax.f32 %v973, %v1105
      %v1245 = vmax.f32 %v974, %v1107
      %v1246 = vmax.f32 %v975, %v1212
      %v1247 = vmax.f32 %v976, %v1214
      %v1248 = vmax.f32 %v977, %v1111
      %v1249 = vmax.f32 %v978, %v1113
      %v1250 = vmax.f32 %v979, %v1218
      %v1251 = vmax.f32 %v980, %v1220
      %v1252 = vmax.f32 %v981, %v1117
      %v1253 = vmax.f32 %v982, %v1119
      %v1254 = vmax.f32 %v983, %v1224
      %v1255 = vmax.f32 %v984, %v1226
      %v1256 = vld [vmem:[%s2] sm:$0xf]
      %v1258 = vlaneseq
      %v1259 = vshrl.u32 %v1258, 7
      %v1260 = vsub.s32 0, %v1259
      %v1261 = vrot.slane %v1256, %v1260
      %v1262 = vlaneseq
      %v1263 = vshrl.u32 %v1262, 7
      %v1264 = vsub.s32 1, %v1263
      %v1265 = vrot.slane %v1256, %v1264
      %v1266 = vlaneseq
      %v1267 = vshrl.u32 %v1266, 7
      %v1268 = vsub.s32 2, %v1267
      %v1269 = vrot.slane %v1256, %v1268
      %v1270 = vlaneseq
      %v1271 = vshrl.u32 %v1270, 7
      %v1272 = vsub.s32 3, %v1271
      %v1273 = vrot.slane %v1256, %v1272
      %v1278 = vadd.f32 %v1228, %v1261
      %v1279 = vadd.f32 %v1229, %v1265
      %v1280 = vadd.f32 %v1230, %v1269
      %v1281 = vadd.f32 %v1231, %v1273
      %v1282 = vadd.f32 %v1232, %v1261
      %v1283 = vadd.f32 %v1233, %v1265
      %v1284 = vadd.f32 %v1234, %v1269
      %v1285 = vadd.f32 %v1235, %v1273
      %v1286 = vadd.f32 %v1236, %v1261
      %v1287 = vadd.f32 %v1237, %v1265
      %v1288 = vadd.f32 %v1238, %v1269
      %v1289 = vadd.f32 %v1239, %v1273
      %v1290 = vadd.f32 %v1240, %v1261
      %v1291 = vadd.f32 %v1241, %v1265
      %v1292 = vadd.f32 %v1242, %v1269
      %v1293 = vadd.f32 %v1243, %v1273
      %v1294 = vadd.f32 %v1244, %v1261
      %v1295 = vadd.f32 %v1245, %v1265
      %v1296 = vadd.f32 %v1246, %v1269
      %v1297 = vadd.f32 %v1247, %v1273
      %v1298 = vadd.f32 %v1248, %v1261
      %v1299 = vadd.f32 %v1249, %v1265
      %v1300 = vadd.f32 %v1250, %v1269
      %v1301 = vadd.f32 %v1251, %v1273
      %v1302 = vadd.f32 %v1252, %v1261
      %v1303 = vadd.f32 %v1253, %v1265
      %v1304 = vadd.f32 %v1254, %v1269
      %v1305 = vadd.f32 %v1255, %v1273
      %v1306 = vmax.f32 %v1278, 0.0
      %v1307 = vmax.f32 %v1279, 0.0
      %v1308 = vmax.f32 %v1280, 0.0
      %v1309 = vmax.f32 %v1281, 0.0
      %v1310 = vmax.f32 %v1282, 0.0
      %v1311 = vmax.f32 %v1283, 0.0
      %v1312 = vmax.f32 %v1284, 0.0
      %v1313 = vmax.f32 %v1285, 0.0
      %v1314 = vmax.f32 %v1286, 0.0
      %v1315 = vmax.f32 %v1287, 0.0
      %v1316 = vmax.f32 %v1288, 0.0
      %v1317 = vmax.f32 %v1289, 0.0
      %v1318 = vmax.f32 %v1290, 0.0
      %v1319 = vmax.f32 %v1291, 0.0
      %v1320 = vmax.f32 %v1292, 0.0
      %v1321 = vmax.f32 %v1293, 0.0
      %v1322 = vmax.f32 %v1294, 0.0
      %v1323 = vmax.f32 %v1295, 0.0
      %v1324 = vmax.f32 %v1296, 0.0
      %v1325 = vmax.f32 %v1297, 0.0
      %v1326 = vmax.f32 %v1298, 0.0
      %v1327 = vmax.f32 %v1299, 0.0
      %v1328 = vmax.f32 %v1300, 0.0
      %v1329 = vmax.f32 %v1301, 0.0
      %v1330 = vmax.f32 %v1302, 0.0
      %v1331 = vmax.f32 %v1303, 0.0
      %v1332 = vmax.f32 %v1304, 0.0
      %v1333 = vmax.f32 %v1305, 0.0
      %v1334 = vpack.c.bf16 %v1310, %v1306
      %v1335 = vpack.c.bf16 %v1311, %v1307
      %v1336 = vpack.c.bf16 %v1312, %v1308
      %v1337 = vpack.c.bf16 %v1313, %v1309
      %v1338 = vpack.c.bf16 %v1318, %v1314
      %v1339 = vpack.c.bf16 %v1319, %v1315
      %v1340 = vpack.c.bf16 %v1320, %v1316
      %v1341 = vpack.c.bf16 %v1321, %v1317
      %v1342 = vpack.c.bf16 %v1326, %v1322
      %v1343 = vpack.c.bf16 %v1327, %v1323
      %v1344 = vpack.c.bf16 %v1328, %v1324
      %v1345 = vpack.c.bf16 %v1329, %v1325
      %v1346 = vpack.c.bf16 %v1330, %v1330
      %v1347 = vpack.c.bf16 %v1331, %v1331
      %v1348 = vpack.c.bf16 %v1332, %v1332
      %v1349 = vpack.c.bf16 %v1333, %v1333
      %v1366 = vunpack.c.l.b16 %v1334
      %v1367 = vunpack.c.l.b16 %v1335
      %v1368 = vunpack.c.l.b16 %v1336
      %v1369 = vunpack.c.l.b16 %v1337
      %v1370 = vunpack.c.h.b16 %v1334
      %v1371 = vunpack.c.h.b16 %v1335
      %v1372 = vunpack.c.h.b16 %v1336
      %v1373 = vunpack.c.h.b16 %v1337
      %v1374 = vunpack.c.l.b16 %v1338
      %v1375 = vunpack.c.l.b16 %v1339
      %v1376 = vunpack.c.l.b16 %v1340
      %v1377 = vunpack.c.l.b16 %v1341
      %v1378 = vunpack.c.h.b16 %v1338
      %v1379 = vunpack.c.h.b16 %v1339
      %v1380 = vunpack.c.h.b16 %v1340
      %v1381 = vunpack.c.h.b16 %v1341
      %v1382 = vunpack.c.l.b16 %v1342
      %v1383 = vunpack.c.l.b16 %v1343
      %v1384 = vunpack.c.l.b16 %v1344
      %v1385 = vunpack.c.l.b16 %v1345
      %v1386 = vunpack.c.h.b16 %v1342
      %v1387 = vunpack.c.h.b16 %v1343
      %v1388 = vunpack.c.h.b16 %v1344
      %v1389 = vunpack.c.h.b16 %v1345
      %v1390 = vunpack.c.l.b16 %v1346
      %v1391 = vunpack.c.l.b16 %v1347
      %v1392 = vunpack.c.l.b16 %v1348
      %v1393 = vunpack.c.l.b16 %v1349
      %v1394 = vpack.c.b16 %v1367, %v1366
      %v1395 = vpack.c.b16 %v1369, %v1368
      %v1396 = vpack.c.b16 %v1371, %v1370
      %v1397 = vpack.c.b16 %v1373, %v1372
      %v1398 = vpack.c.b16 %v1375, %v1374
      %v1399 = vpack.c.b16 %v1377, %v1376
      %v1400 = vpack.c.b16 %v1379, %v1378
      %v1401 = vpack.c.b16 %v1381, %v1380
      %v1402 = vpack.c.b16 %v1383, %v1382
      %v1403 = vpack.c.b16 %v1385, %v1384
      %v1404 = vpack.c.b16 %v1387, %v1386
      %v1405 = vpack.c.b16 %v1389, %v1388
      %v1406 = vpack.c.b16 %v1391, %v1390
      %v1407 = vpack.c.b16 %v1393, %v1392
      %1422 = vst [vmem:[%s170] sm:$0xff] %v1394
      %1423 = vst [vmem:[%s170 + $0x8] sm:$0xff] %v1395
      %1424 = vst [vmem:[%s170 + $0x10] sm:$0xff] %v1396
      %1425 = vst [vmem:[%s170 + $0x18] sm:$0xff] %v1397
      %1426 = vst [vmem:[%s170 + $0x20] sm:$0xff] %v1398
      %1427 = vst [vmem:[%s170 + $0x28] sm:$0xff] %v1399
      %1428 = vst [vmem:[%s170 + $0x30] sm:$0xff] %v1400
      %1429 = vst [vmem:[%s170 + $0x38] sm:$0xff] %v1401
      %1430 = vst [vmem:[%s170 + $0x40] sm:$0xff] %v1402
      %1431 = vst [vmem:[%s170 + $0x48] sm:$0xff] %v1403
      %1432 = vst [vmem:[%s170 + $0x50] sm:$0xff] %v1404
      %1433 = vst [vmem:[%s170 + $0x58] sm:$0xff] %v1405
      %vm1434 = vcmask 1040384
      %vm1435 = vsmask.f32 256
      %vm1436 = vmand %vm1434, %vm1435
      %vm1437 = vcmask 1044484
      %vm1438 = vsmask.f32 4352
      %vm1439 = vmand %vm1437, %vm1438
      %vm1440 = vmor %vm1439, %vm1436
      %v1441 = vld [vmem:[%s170 + $0x60] sm:$0x11]
      %v1442 = vsel %vm1440, %v1406, %v1441
      %1443 = vst [vmem:[%s170 + $0x60] sm:$0x11] %v1442
      %v1444 = vld [vmem:[%s170 + $0x68] sm:$0x11]
      %v1445 = vsel %vm1440, %v1407, %v1444
      %1446 = vst [vmem:[%s170 + $0x68] sm:$0x11] %v1445
      %p1447 = scmp.lt.s32.totalorder %s14, 1
      %s1448 = scalar_select %p1447, %s14, 1
      %s1449 = smul.addr %s1448, 28
      %s1450 = smul.addr %s1449, 4
      %s1451 = scalar_lea.vmem %s3, %s1450
      // Predicated region
      $region33: #{tpu_custom_call.1} parent=31 // pred_check
        %p1452 = pneg %p100
      $region34: #{tpu_custom_call.1} parent=31 // pred_check_branch
        %1454 = sbr.rel (%p1452) target = $region36
      $region35: #{tpu_custom_call.1} parent=31 // pred_region
        _
      $region36: #{tpu_custom_call.1} parent=31 // pred_fallthru
        _
    $region32: #{tpu_custom_call.1} parent=5 // pred_fallthru
      _
    %p1455 = scmp.le.s32.totalorder 2, %s9
    // Predicated region
    $region37: #{tpu_custom_call.1} parent=5 // pred_check
      %p1456 = pneg %p1455
    $region38: #{tpu_custom_call.1} parent=5 // pred_check_branch
      %1458 = sbr.rel (%p1456) target = $region40
    $region39: #{tpu_custom_call.1} parent=5 // pred_region
      %s1459 = ssub.s32 %s9, 2
      // Predicated region
      $region41: #{tpu_custom_call.1} parent=39 // pred_check
        %p1460 = pneg %p106
      $region42: #{tpu_custom_call.1} parent=39 // pred_check_branch
        %1462 = sbr.rel (%p1460) target = $region44
      $region43: #{tpu_custom_call.1} parent=39 // pred_region
        %p1463 = scmp.lt.s32.totalorder %s15, 1
        %s1464 = scalar_select %p1463, %s15, 1
        %s1465 = smul.addr %s1464, 28
        %s1466 = smul.addr %s1465, 4
        %s1467 = scalar_lea.vmem %s3, %s1466
      $region44: #{tpu_custom_call.1} parent=39 // pred_fallthru
        _
    $region40: #{tpu_custom_call.1} parent=5 // pred_fallthru
      _
  $region6: #{tpu_custom_call.1} parent=0 // loop_footer
    %s13 = sadd.s32 1, %s9
  $region7: #{tpu_custom_call.1} parent=0 // loop_footer_branch
    %8 = sbr.rel target = $region3
  $region8: #{tpu_custom_call.1} parent=0 // loop_exit
    _

</llo_original>
